<compile_context>
chip_gen: v5e
topology: v5e:2x2
jax: 0.10.0
libtpu: 0.0.40
codegen_flags: <defaults>
</compile_context>

<pallas_src>
import jax
import jax.numpy as jnp
from jax import lax
from jax.experimental import pallas as pl
from jax.experimental.pallas import tpu as pltpu


def _make_kernel(TD, H, WC):
    """TD: depth rows per tile, H: height, WC = W * C (lane width)."""
    TDH = TD * H            # output rows per grid step
    EH = (TD + 2) * H       # rows of the depth-extended (haloed) tile

    def kernel(xc_ref, xp_ref, xn_ref, bk_ref, sb_ref, o_ref, xs_ref, acc_ref):
        # xc_ref : (1, TD*H, WC)      current depth tile (also the residual)
        # xp_ref : (1, H, WC)         depth slice just before the tile (clamped)
        # xn_ref : (1, H, WC)         depth slice just after the tile (clamped)
        # bk_ref : (9, WC, WC) bf16   banded weights, index = kd*3 + kh
        # sb_ref : (2, WC) f32        row 0 = BN scale, row 1 = BN bias (lane-tiled)
        # o_ref  : (1, TD*H, WC)      output tile
        # xs_ref : (3, EH, WC) f32    scratch: kh-shifted, depth-extended input
        # acc_ref: (TD*H, WC) f32     scratch accumulator
        dt = pl.program_id(1)
        ndt = pl.num_programs(1)

        # ---- stage the depth-extended tile (kh == 1 plane) -------------------
        xs_ref[1, H:H + TDH, :] = xc_ref[0]

        # depth halo rows: neighbour slices, or zeros at the volume boundary
        xs_ref[1, 0:H, :] = xp_ref[0]
        xs_ref[1, H + TDH:EH, :] = xn_ref[0]

        @pl.when(dt == 0)
        def _():
            xs_ref[1, 0:H, :] = jnp.zeros((H, WC), jnp.float32)

        @pl.when(dt == ndt - 1)
        def _():
            xs_ref[1, H + TDH:EH, :] = jnp.zeros((H, WC), jnp.float32)

        # ---- build the two kh-shifted planes ONCE (not per tap) --------------
        center = xs_ref[1]                                   # (EH, WC) f32
        zrow = jnp.zeros((1, WC), jnp.float32)
        down = jnp.concatenate([zrow, center[:EH - 1, :]], axis=0)  # row r <- r-1
        up = jnp.concatenate([center[1:, :], zrow], axis=0)         # row r <- r+1
        row = lax.broadcasted_iota(jnp.int32, (EH, WC), 0)
        # h == 0 rows of the kh=0 plane and h == H-1 rows of the kh=2 plane are
        # the H zero-padding of the convolution.
        xs_ref[0] = jnp.where(row % H == 0, 0.0, down)
        xs_ref[2] = jnp.where(row % H == H - 1, 0.0, up)

        # ---- 9 MXU matmuls: (TD*H, W*Cin) x (W*Cin, W*Cout), bf16 operands ---
        acc_ref[...] = jnp.zeros_like(acc_ref)
        for kd in range(3):
            for kh in range(3):
                # aligned slice: row offset kd*H is a multiple of 8
                lhs = xs_ref[kh, kd * H:kd * H + TDH, :].astype(jnp.bfloat16)
                acc_ref[...] += jnp.dot(
                    lhs, bk_ref[kd * 3 + kh],
                    preferred_element_type=jnp.float32)

        # ---- fused BN (folded) + residual + relu, lane-dense (WC=128) store --
        scale = sb_ref[0:1, :]
        bias = sb_ref[1:2, :]
        out = acc_ref[...] * scale + bias + xc_ref[0]
        o_ref[0] = jnp.maximum(out, 0.0).astype(o_ref.dtype)

    return kernel


def basic_block_base2(x, weight, gamma, beta, running_mean, running_var,
                      eps=1e-5, td=4):
    """x: (N, D, H, W, C) f32, weight: (3,3,3,Cin,Cout) with Cin == Cout == C."""
    N, D, H, W, C = x.shape
    Cout = weight.shape[-1]
    assert weight.shape == (3, 3, 3, C, Cout)
    assert Cout == C, "residual add requires inplanes == planes (stride=1)"
    WC = W * C
    # lane-dense layout requirement; for small C one would pad C (or fold H too)
    assert WC % 128 == 0, "W*C must be a multiple of 128 for lane-dense tiles"
    assert H % 8 == 0 and D % td == 0
    TD = td
    TDH = TD * H
    ndt = D // TD

    # Fold BN (inference) into per-channel scale/bias, tiled across W so it
    # applies directly on the (W*Cout) lane axis.
    scale = gamma / jnp.sqrt(running_var + eps)
    bias = beta - running_mean * scale
    sb = jnp.stack([jnp.tile(scale, W), jnp.tile(bias, W)]).astype(jnp.float32)

    # Fold the kw taps + W zero-padding into a banded (W*Cin, W*Cout) weight
    # per (kd, kh):  B[kd,kh, wi*C+ci, wo*C+co] = W[kd,kh,wi-wo+1,ci,co].
    B = jnp.zeros((3, 3, W, C, W, Cout), weight.dtype)
    for kw in range(3):
        for wo in range(W):
            wi = wo + kw - 1
            if 0 <= wi < W:
                B = B.at[:, :, wi, :, wo, :].set(weight[:, :, kw, :, :])
    bk = B.reshape(9, W * C, W * Cout).astype(jnp.bfloat16)

    # (N, D, H, W, C) -> (N, D*H, W*C): free, contiguous reshape; lane dim = 128
    x2 = x.reshape(N, D * H, WC).astype(jnp.float32)

    kernel = _make_kernel(TD, H, WC)

    def xc_map(n, dt):
        return (n, dt, 0)

    def xp_map(n, dt):                       # depth slice dt*TD - 1, clamped
        return (n, jnp.maximum(dt * TD - 1, 0), 0)

    def xn_map(n, dt):                       # depth slice dt*TD + TD, clamped
        return (n, jnp.minimum(dt * TD + TD, D - 1), 0)

    out2 = pl.pallas_call(
        kernel,
        out_shape=jax.ShapeDtypeStruct((N, D * H, WC), jnp.float32),
        grid_spec=pltpu.PrefetchScalarGridSpec(
            num_scalar_prefetch=0,
            grid=(N, ndt),
            in_specs=[
                pl.BlockSpec((1, TDH, WC), xc_map),          # current tile
                pl.BlockSpec((1, H, WC), xp_map),            # prev-depth halo row
                pl.BlockSpec((1, H, WC), xn_map),            # next-depth halo row
                pl.BlockSpec((9, WC, WC), lambda n, dt: (0, 0, 0)),  # weights
                pl.BlockSpec((2, WC), lambda n, dt: (0, 0)),         # BN scale/bias
            ],
            out_specs=pl.BlockSpec((1, TDH, WC), xc_map),
            scratch_shapes=[
                pltpu.VMEM((3, (TD + 2) * H, WC), jnp.float32),  # shifted input
                pltpu.VMEM((TDH, WC), jnp.float32),              # accumulator
            ],
        ),
        compiler_params=pltpu.CompilerParams(
            dimension_semantics=("parallel", "parallel"),
            vmem_limit_bytes=32 * 1024 * 1024,
        ),
    )(x2, x2, x2, bk, sb)

    return out2.reshape(N, D, H, W, C)


def reference(x, weight, gamma, beta, running_mean, running_var, eps=1e-5):
    # Match the kernel's bf16 matmul operands (f32 accumulation) exactly.
    xb = x.astype(jnp.bfloat16).astype(jnp.float32)
    wb = weight.astype(jnp.bfloat16).astype(jnp.float32)
    out = lax.conv_general_dilated(
        xb, wb, window_strides=(1, 1, 1), padding="SAME",
        dimension_numbers=("NDHWC", "DHWIO", "NDHWC"),
        precision=lax.Precision.HIGHEST)
    scale = gamma / jnp.sqrt(running_var + eps)
    out = out * scale + (beta - running_mean * scale)
    out = out + x
    return jnp.maximum(out, 0.0)


if __name__ == "__main__":
    key = jax.random.PRNGKey(0)
    k_x, k_w, k_g, k_b, k_m, k_v = jax.random.split(key, 6)

    # inplanes = planes = 16, D(spatial dim)=3 conv; W*C = 128 -> lane-dense
    N, D, H, W, C = 2, 8, 8, 8, 16
    x = jax.random.normal(k_x, (N, D, H, W, C), jnp.float32)

    weight = 0.1 * jax.random.normal(k_w, (3, 3, 3, C, C), jnp.float32)
    gamma = 1.0 + 0.1 * jax.random.normal(k_g, (C,), jnp.float32)
    beta = 0.1 * jax.random.normal(k_b, (C,), jnp.float32)
    running_mean = 0.1 * jax.random.normal(k_m, (C,), jnp.float32)
    running_var = jnp.abs(jax.random.normal(k_v, (C,), jnp.float32)) + 0.5

    out = basic_block_base2(x, weight, gamma, beta, running_mean, running_var)
    out = jax.block_until_ready(out)

    ref = reference(x, weight, gamma, beta, running_mean, running_var)
    assert out.shape == (N, D, H, W, C)
    err = float(jnp.max(jnp.abs(out - ref)))
    assert jnp.allclose(out, ref, atol=2e-3, rtol=2e-3), f"mismatch: {err}"

    # TODO(synk): MinkowskiEngine operates on sparse coordinate tensors; this
    # implements the dense 3D-conv analogue of the block's forward semantics.
    print("KERNEL_OK")
</pallas_src>

<mosaic_0001>
module attributes {stable_mosaic.version = 11 : i64} {
  func.func @kernel(%arg0: i32, %arg1: i32, %arg2: memref<1x32x128xf32, #tpu.memory_space<vmem>>, %arg3: memref<1x8x128xf32, #tpu.memory_space<vmem>>, %arg4: memref<1x8x128xf32, #tpu.memory_space<vmem>>, %arg5: memref<9x128x128xbf16, #tpu.memory_space<vmem>>, %arg6: memref<2x128xf32, #tpu.memory_space<vmem>>, %arg7: memref<1x32x128xf32, #tpu.memory_space<vmem>>, %arg8: memref<3x48x128xf32, #tpu.memory_space<vmem>>, %arg9: memref<32x128xf32, #tpu.memory_space<vmem>>) attributes {dimension_semantics = [#tpu.dimension_semantics<parallel>, #tpu.dimension_semantics<parallel>], iteration_bounds = array<i64: 2, 2>, scalar_prefetch = 0 : i64, scratch_operands = 2 : i64, tpu.core_type = #tpu.core_type<tc>, window_params = [{transform_indices = @transform_0, window_bounds = array<i64: 1, 32, 128>}, {transform_indices = @transform_1, window_bounds = array<i64: 1, 8, 128>}, {transform_indices = @transform_2, window_bounds = array<i64: 1, 8, 128>}, {pipeline_mode = #tpu.pipeline_mode<synchronous>, transform_indices = @transform_3, window_bounds = array<i64: 9, 128, 128>}, {pipeline_mode = #tpu.pipeline_mode<synchronous>, transform_indices = @transform_4, window_bounds = array<i64: 2, 128>}, {transform_indices = @transform_5, window_bounds = array<i64: 1, 32, 128>}]} {
    %c0 = arith.constant 0 : index
    %c0_0 = arith.constant 0 : index
    %c0_1 = arith.constant 0 : index
    %0 = vector.load %arg2[%c0, %c0_0, %c0_1] : memref<1x32x128xf32, #tpu.memory_space<vmem>>, vector<1x32x128xf32>
    %1 = vector.shape_cast %0 : vector<1x32x128xf32> to vector<32x128xf32>
    %c1 = arith.constant 1 : index
    %c8 = arith.constant 8 : index
    %c0_2 = arith.constant 0 : index
    %2 = vector.load %arg8[%c1, %c8, %c0_2] : memref<3x48x128xf32, #tpu.memory_space<vmem>>, vector<1x32x128xf32>
    %3 = vector.shape_cast %2 : vector<1x32x128xf32> to vector<32x128xf32>
    %4 = vector.shape_cast %1 : vector<32x128xf32> to vector<1x32x128xf32>
    tpu.vector_store %arg8[%c1, %c8, %c0_2], %4 {strides = array<i32>} : memref<3x48x128xf32, #tpu.memory_space<vmem>>, vector<1x32x128xf32>,
    %c0_3 = arith.constant 0 : index
    %c0_4 = arith.constant 0 : index
    %c0_5 = arith.constant 0 : index
    %5 = vector.load %arg3[%c0_3, %c0_4, %c0_5] : memref<1x8x128xf32, #tpu.memory_space<vmem>>, vector<1x8x128xf32>
    %6 = vector.shape_cast %5 : vector<1x8x128xf32> to vector<8x128xf32>
    %c1_6 = arith.constant 1 : index
    %c0_7 = arith.constant 0 : index
    %c0_8 = arith.constant 0 : index
    %7 = vector.load %arg8[%c1_6, %c0_7, %c0_8] : memref<3x48x128xf32, #tpu.memory_space<vmem>>, vector<1x8x128xf32>
    %8 = vector.shape_cast %7 : vector<1x8x128xf32> to vector<8x128xf32>
    %9 = vector.shape_cast %6 : vector<8x128xf32> to vector<1x8x128xf32>
    tpu.vector_store %arg8[%c1_6, %c0_7, %c0_8], %9 {strides = array<i32>} : memref<3x48x128xf32, #tpu.memory_space<vmem>>, vector<1x8x128xf32>,
    %c0_9 = arith.constant 0 : index
    %c0_10 = arith.constant 0 : index
    %c0_11 = arith.constant 0 : index
    %10 = vector.load %arg4[%c0_9, %c0_10, %c0_11] : memref<1x8x128xf32, #tpu.memory_space<vmem>>, vector<1x8x128xf32>
    %11 = vector.shape_cast %10 : vector<1x8x128xf32> to vector<8x128xf32>
    %c1_12 = arith.constant 1 : index
    %c40 = arith.constant 40 : index
    %c0_13 = arith.constant 0 : index
    %12 = vector.load %arg8[%c1_12, %c40, %c0_13] : memref<3x48x128xf32, #tpu.memory_space<vmem>>, vector<1x8x128xf32>
    %13 = vector.shape_cast %12 : vector<1x8x128xf32> to vector<8x128xf32>
    %14 = vector.shape_cast %11 : vector<8x128xf32> to vector<1x8x128xf32>
    tpu.vector_store %arg8[%c1_12, %c40, %c0_13], %14 {strides = array<i32>} : memref<3x48x128xf32, #tpu.memory_space<vmem>>, vector<1x8x128xf32>,
    %c0_i32 = arith.constant 0 : i32
    %15 = arith.cmpi eq, %arg1, %c0_i32 : i32
    %16 = arith.extui %15 : i1 to i32
    %c0_i32_14 = arith.constant 0 : i32
    %17 = arith.cmpi ne, %16, %c0_i32_14 : i32
    scf.if %17 {
      %cst_147 = arith.constant 0.000000e+00 : f32
      %173 = vector.broadcast %cst_147 : f32 to vector<8x128xf32>
      %c1_148 = arith.constant 1 : index
      %c0_149 = arith.constant 0 : index
      %c0_150 = arith.constant 0 : index
      %174 = vector.load %arg8[%c1_148, %c0_149, %c0_150] : memref<3x48x128xf32, #tpu.memory_space<vmem>>, vector<1x8x128xf32>
      %175 = vector.shape_cast %174 : vector<1x8x128xf32> to vector<8x128xf32>
      %176 = vector.shape_cast %173 : vector<8x128xf32> to vector<1x8x128xf32>
      tpu.vector_store %arg8[%c1_148, %c0_149, %c0_150], %176 {strides = array<i32>} : memref<3x48x128xf32, #tpu.memory_space<vmem>>, vector<1x8x128xf32>,
    } else {
    }
    %c1_i32 = arith.constant 1 : i32
    %18 = arith.cmpi eq, %arg1, %c1_i32 : i32
    %19 = arith.extui %18 : i1 to i32
    %c0_i32_15 = arith.constant 0 : i32
    %20 = arith.cmpi ne, %19, %c0_i32_15 : i32
    scf.if %20 {
      %cst_147 = arith.constant 0.000000e+00 : f32
      %173 = vector.broadcast %cst_147 : f32 to vector<8x128xf32>
      %c1_148 = arith.constant 1 : index
      %c40_149 = arith.constant 40 : index
      %c0_150 = arith.constant 0 : index
      %174 = vector.load %arg8[%c1_148, %c40_149, %c0_150] : memref<3x48x128xf32, #tpu.memory_space<vmem>>, vector<1x8x128xf32>
      %175 = vector.shape_cast %174 : vector<1x8x128xf32> to vector<8x128xf32>
      %176 = vector.shape_cast %173 : vector<8x128xf32> to vector<1x8x128xf32>
      tpu.vector_store %arg8[%c1_148, %c40_149, %c0_150], %176 {strides = array<i32>} : memref<3x48x128xf32, #tpu.memory_space<vmem>>, vector<1x8x128xf32>,
    } else {
    }
    %c1_16 = arith.constant 1 : index
    %c0_17 = arith.constant 0 : index
    %c0_18 = arith.constant 0 : index
    %21 = vector.load %arg8[%c1_16, %c0_17, %c0_18] : memref<3x48x128xf32, #tpu.memory_space<vmem>>, vector<1x48x128xf32>
    %22 = vector.shape_cast %21 : vector<1x48x128xf32> to vector<48x128xf32>
    %cst = arith.constant 0.000000e+00 : f32
    %23 = vector.broadcast %cst : f32 to vector<1x128xf32>
    %24 = vector.extract_strided_slice %22 {offsets = [0, 0], sizes = [47, 128], strides = [1, 1]} : vector<48x128xf32> to vector<47x128xf32>
    %25 = tpu.concatenate %23, %24 in 0 : vector<1x128xf32>, vector<47x128xf32> -> vector<48x128xf32>
    %26 = vector.extract_strided_slice %22 {offsets = [1, 0], sizes = [47, 128], strides = [1, 1]} : vector<48x128xf32> to vector<47x128xf32>
    %27 = tpu.concatenate %26, %23 in 0 : vector<47x128xf32>, vector<1x128xf32> -> vector<48x128xf32>
    %28 = tpu.iota {dimensions = array<i32: 0>} : vector<48x128xi32>
    %c8_i32 = arith.constant 8 : i32
    %c0_i32_19 = arith.constant 0 : i32
    %29 = arith.cmpi eq, %c8_i32, %c0_i32_19 : i32
    %c1_i32_20 = arith.constant 1 : i32
    %30 = arith.select %29, %c1_i32_20, %c8_i32 : i32
    %31 = vector.broadcast %30 : i32 to vector<48x128xi32>
    %32 = arith.remsi %28, %31 : vector<48x128xi32>
    %c0_i32_21 = arith.constant 0 : i32
    %33 = vector.broadcast %c0_i32_21 : i32 to vector<48x128xi32>
    %34 = arith.cmpi ne, %32, %33 : vector<48x128xi32>
    %c0_i32_22 = arith.constant 0 : i32
    %35 = vector.broadcast %c0_i32_22 : i32 to vector<48x128xi32>
    %36 = arith.cmpi slt, %32, %35 : vector<48x128xi32>
    %c0_i32_23 = arith.constant 0 : i32
    %37 = arith.cmpi slt, %30, %c0_i32_23 : i32
    %38 = vector.broadcast %37 : i1 to vector<48x128xi1>
    %39 = vector.broadcast %38 : vector<48x128xi1> to vector<48x128xi1>
    %40 = arith.xori %36, %39 : vector<48x128xi1>
    %41 = arith.andi %40, %34 : vector<48x128xi1>
    %42 = vector.broadcast %30 : i32 to vector<48x128xi32>
    %43 = arith.addi %32, %42 : vector<48x128xi32>
    %44 = arith.select %41, %43, %32 : vector<48x128xi1>, vector<48x128xi32>
    %c0_i32_24 = arith.constant 0 : i32
    %45 = vector.broadcast %c0_i32_24 : i32 to vector<48x128xi32>
    %46 = arith.cmpi eq, %44, %45 : vector<48x128xi32>
    %cst_25 = arith.constant 0.000000e+00 : f32
    %47 = vector.broadcast %cst_25 : f32 to vector<48x128xf32>
    %48 = arith.select %46, %47, %25 : vector<48x128xi1>, vector<48x128xf32>
    %c0_26 = arith.constant 0 : index
    %c0_27 = arith.constant 0 : index
    %c0_28 = arith.constant 0 : index
    %49 = vector.load %arg8[%c0_26, %c0_27, %c0_28] : memref<3x48x128xf32, #tpu.memory_space<vmem>>, vector<1x48x128xf32>
    %50 = vector.shape_cast %49 : vector<1x48x128xf32> to vector<48x128xf32>
    %51 = vector.shape_cast %48 : vector<48x128xf32> to vector<1x48x128xf32>
    tpu.vector_store %arg8[%c0_26, %c0_27, %c0_28], %51 {strides = array<i32>} : memref<3x48x128xf32, #tpu.memory_space<vmem>>, vector<1x48x128xf32>,
    %c8_i32_29 = arith.constant 8 : i32
    %c0_i32_30 = arith.constant 0 : i32
    %52 = arith.cmpi eq, %c8_i32_29, %c0_i32_30 : i32
    %c1_i32_31 = arith.constant 1 : i32
    %53 = arith.select %52, %c1_i32_31, %c8_i32_29 : i32
    %54 = vector.broadcast %53 : i32 to vector<48x128xi32>
    %55 = arith.remsi %28, %54 : vector<48x128xi32>
    %c0_i32_32 = arith.constant 0 : i32
    %56 = vector.broadcast %c0_i32_32 : i32 to vector<48x128xi32>
    %57 = arith.cmpi ne, %55, %56 : vector<48x128xi32>
    %c0_i32_33 = arith.constant 0 : i32
    %58 = vector.broadcast %c0_i32_33 : i32 to vector<48x128xi32>
    %59 = arith.cmpi slt, %55, %58 : vector<48x128xi32>
    %c0_i32_34 = arith.constant 0 : i32
    %60 = arith.cmpi slt, %53, %c0_i32_34 : i32
    %61 = vector.broadcast %60 : i1 to vector<48x128xi1>
    %62 = vector.broadcast %61 : vector<48x128xi1> to vector<48x128xi1>
    %63 = arith.xori %59, %62 : vector<48x128xi1>
    %64 = arith.andi %63, %57 : vector<48x128xi1>
    %65 = vector.broadcast %53 : i32 to vector<48x128xi32>
    %66 = arith.addi %55, %65 : vector<48x128xi32>
    %67 = arith.select %64, %66, %55 : vector<48x128xi1>, vector<48x128xi32>
    %c7_i32 = arith.constant 7 : i32
    %68 = vector.broadcast %c7_i32 : i32 to vector<48x128xi32>
    %69 = arith.cmpi eq, %67, %68 : vector<48x128xi32>
    %cst_35 = arith.constant 0.000000e+00 : f32
    %70 = vector.broadcast %cst_35 : f32 to vector<48x128xf32>
    %71 = arith.select %69, %70, %27 : vector<48x128xi1>, vector<48x128xf32>
    %c2 = arith.constant 2 : index
    %c0_36 = arith.constant 0 : index
    %c0_37 = arith.constant 0 : index
    %72 = vector.load %arg8[%c2, %c0_36, %c0_37] : memref<3x48x128xf32, #tpu.memory_space<vmem>>, vector<1x48x128xf32>
    %73 = vector.shape_cast %72 : vector<1x48x128xf32> to vector<48x128xf32>
    %74 = vector.shape_cast %71 : vector<48x128xf32> to vector<1x48x128xf32>
    tpu.vector_store %arg8[%c2, %c0_36, %c0_37], %74 {strides = array<i32>} : memref<3x48x128xf32, #tpu.memory_space<vmem>>, vector<1x48x128xf32>,
    %cst_38 = arith.constant 0.000000e+00 : f32
    %75 = vector.broadcast %cst_38 : f32 to vector<32x128xf32>
    %c0_39 = arith.constant 0 : index
    %c0_40 = arith.constant 0 : index
    %76 = vector.load %arg9[%c0_39, %c0_40] : memref<32x128xf32, #tpu.memory_space<vmem>>, vector<32x128xf32>
    tpu.vector_store %arg9[%c0_39, %c0_40], %75 {strides = array<i32>} : memref<32x128xf32, #tpu.memory_space<vmem>>, vector<32x128xf32>,
    %c0_41 = arith.constant 0 : index
    %c0_42 = arith.constant 0 : index
    %c0_43 = arith.constant 0 : index
    %77 = vector.load %arg8[%c0_41, %c0_42, %c0_43] : memref<3x48x128xf32, #tpu.memory_space<vmem>>, vector<1x32x128xf32>
    %78 = vector.shape_cast %77 : vector<1x32x128xf32> to vector<32x128xf32>
    %79 = arith.truncf %78 : vector<32x128xf32> to vector<32x128xbf16>
    %c0_44 = arith.constant 0 : index
    %c0_45 = arith.constant 0 : index
    %80 = vector.load %arg9[%c0_44, %c0_45] : memref<32x128xf32, #tpu.memory_space<vmem>>, vector<32x128xf32>
    %c0_46 = arith.constant 0 : index
    %c0_47 = arith.constant 0 : index
    %c0_48 = arith.constant 0 : index
    %81 = vector.load %arg5[%c0_46, %c0_47, %c0_48] : memref<9x128x128xbf16, #tpu.memory_space<vmem>>, vector<1x128x128xbf16>
    %82 = vector.shape_cast %81 : vector<1x128x128xbf16> to vector<128x128xbf16>
    %cst_49 = arith.constant dense<0.000000e+00> : vector<32x128xf32>
    %83 = tpu.matmul %79, %82, %cst_49 {dimension_numbers = #tpu.dot_dimension_numbers<[1], [0], [0], [1], [0, 0, 1, 1], [], []>} : vector<32x128xbf16>, vector<128x128xbf16>, vector<32x128xf32> -> vector<32x128xf32>
    %84 = arith.addf %80, %83 : vector<32x128xf32>
    %c0_50 = arith.constant 0 : index
    %c0_51 = arith.constant 0 : index
    %85 = vector.load %arg9[%c0_50, %c0_51] : memref<32x128xf32, #tpu.memory_space<vmem>>, vector<32x128xf32>
    tpu.vector_store %arg9[%c0_50, %c0_51], %84 {strides = array<i32>} : memref<32x128xf32, #tpu.memory_space<vmem>>, vector<32x128xf32>,
    %c1_52 = arith.constant 1 : index
    %c0_53 = arith.constant 0 : index
    %c0_54 = arith.constant 0 : index
    %86 = vector.load %arg8[%c1_52, %c0_53, %c0_54] : memref<3x48x128xf32, #tpu.memory_space<vmem>>, vector<1x32x128xf32>
    %87 = vector.shape_cast %86 : vector<1x32x128xf32> to vector<32x128xf32>
    %88 = arith.truncf %87 : vector<32x128xf32> to vector<32x128xbf16>
    %c0_55 = arith.constant 0 : index
    %c0_56 = arith.constant 0 : index
    %89 = vector.load %arg9[%c0_55, %c0_56] : memref<32x128xf32, #tpu.memory_space<vmem>>, vector<32x128xf32>
    %c1_57 = arith.constant 1 : index
    %c0_58 = arith.constant 0 : index
    %c0_59 = arith.constant 0 : index
    %90 = vector.load %arg5[%c1_57, %c0_58, %c0_59] : memref<9x128x128xbf16, #tpu.memory_space<vmem>>, vector<1x128x128xbf16>
    %91 = vector.shape_cast %90 : vector<1x128x128xbf16> to vector<128x128xbf16>
    %cst_60 = arith.constant dense<0.000000e+00> : vector<32x128xf32>
    %92 = tpu.matmul %88, %91, %cst_60 {dimension_numbers = #tpu.dot_dimension_numbers<[1], [0], [0], [1], [0, 0, 1, 1], [], []>} : vector<32x128xbf16>, vector<128x128xbf16>, vector<32x128xf32> -> vector<32x128xf32>
    %93 = arith.addf %89, %92 : vector<32x128xf32>
    %c0_61 = arith.constant 0 : index
    %c0_62 = arith.constant 0 : index
    %94 = vector.load %arg9[%c0_61, %c0_62] : memref<32x128xf32, #tpu.memory_space<vmem>>, vector<32x128xf32>
    tpu.vector_store %arg9[%c0_61, %c0_62], %93 {strides = array<i32>} : memref<32x128xf32, #tpu.memory_space<vmem>>, vector<32x128xf32>,
    %c2_63 = arith.constant 2 : index
    %c0_64 = arith.constant 0 : index
    %c0_65 = arith.constant 0 : index
    %95 = vector.load %arg8[%c2_63, %c0_64, %c0_65] : memref<3x48x128xf32, #tpu.memory_space<vmem>>, vector<1x32x128xf32>
    %96 = vector.shape_cast %95 : vector<1x32x128xf32> to vector<32x128xf32>
    %97 = arith.truncf %96 : vector<32x128xf32> to vector<32x128xbf16>
    %c0_66 = arith.constant 0 : index
    %c0_67 = arith.constant 0 : index
    %98 = vector.load %arg9[%c0_66, %c0_67] : memref<32x128xf32, #tpu.memory_space<vmem>>, vector<32x128xf32>
    %c2_68 = arith.constant 2 : index
    %c0_69 = arith.constant 0 : index
    %c0_70 = arith.constant 0 : index
    %99 = vector.load %arg5[%c2_68, %c0_69, %c0_70] : memref<9x128x128xbf16, #tpu.memory_space<vmem>>, vector<1x128x128xbf16>
    %100 = vector.shape_cast %99 : vector<1x128x128xbf16> to vector<128x128xbf16>
    %cst_71 = arith.constant dense<0.000000e+00> : vector<32x128xf32>
    %101 = tpu.matmul %97, %100, %cst_71 {dimension_numbers = #tpu.dot_dimension_numbers<[1], [0], [0], [1], [0, 0, 1, 1], [], []>} : vector<32x128xbf16>, vector<128x128xbf16>, vector<32x128xf32> -> vector<32x128xf32>
    %102 = arith.addf %98, %101 : vector<32x128xf32>
    %c0_72 = arith.constant 0 : index
    %c0_73 = arith.constant 0 : index
    %103 = vector.load %arg9[%c0_72, %c0_73] : memref<32x128xf32, #tpu.memory_space<vmem>>, vector<32x128xf32>
    tpu.vector_store %arg9[%c0_72, %c0_73], %102 {strides = array<i32>} : memref<32x128xf32, #tpu.memory_space<vmem>>, vector<32x128xf32>,
    %c0_74 = arith.constant 0 : index
    %c8_75 = arith.constant 8 : index
    %c0_76 = arith.constant 0 : index
    %104 = vector.load %arg8[%c0_74, %c8_75, %c0_76] : memref<3x48x128xf32, #tpu.memory_space<vmem>>, vector<1x32x128xf32>
    %105 = vector.shape_cast %104 : vector<1x32x128xf32> to vector<32x128xf32>
    %106 = arith.truncf %105 : vector<32x128xf32> to vector<32x128xbf16>
    %c0_77 = arith.constant 0 : index
    %c0_78 = arith.constant 0 : index
    %107 = vector.load %arg9[%c0_77, %c0_78] : memref<32x128xf32, #tpu.memory_space<vmem>>, vector<32x128xf32>
    %c3 = arith.constant 3 : index
    %c0_79 = arith.constant 0 : index
    %c0_80 = arith.constant 0 : index
    %108 = vector.load %arg5[%c3, %c0_79, %c0_80] : memref<9x128x128xbf16, #tpu.memory_space<vmem>>, vector<1x128x128xbf16>
    %109 = vector.shape_cast %108 : vector<1x128x128xbf16> to vector<128x128xbf16>
    %cst_81 = arith.constant dense<0.000000e+00> : vector<32x128xf32>
    %110 = tpu.matmul %106, %109, %cst_81 {dimension_numbers = #tpu.dot_dimension_numbers<[1], [0], [0], [1], [0, 0, 1, 1], [], []>} : vector<32x128xbf16>, vector<128x128xbf16>, vector<32x128xf32> -> vector<32x128xf32>
    %111 = arith.addf %107, %110 : vector<32x128xf32>
    %c0_82 = arith.constant 0 : index
    %c0_83 = arith.constant 0 : index
    %112 = vector.load %arg9[%c0_82, %c0_83] : memref<32x128xf32, #tpu.memory_space<vmem>>, vector<32x128xf32>
    tpu.vector_store %arg9[%c0_82, %c0_83], %111 {strides = array<i32>} : memref<32x128xf32, #tpu.memory_space<vmem>>, vector<32x128xf32>,
    %c1_84 = arith.constant 1 : index
    %c8_85 = arith.constant 8 : index
    %c0_86 = arith.constant 0 : index
    %113 = vector.load %arg8[%c1_84, %c8_85, %c0_86] : memref<3x48x128xf32, #tpu.memory_space<vmem>>, vector<1x32x128xf32>
    %114 = vector.shape_cast %113 : vector<1x32x128xf32> to vector<32x128xf32>
    %115 = arith.truncf %114 : vector<32x128xf32> to vector<32x128xbf16>
    %c0_87 = arith.constant 0 : index
    %c0_88 = arith.constant 0 : index
    %116 = vector.load %arg9[%c0_87, %c0_88] : memref<32x128xf32, #tpu.memory_space<vmem>>, vector<32x128xf32>
    %c4 = arith.constant 4 : index
    %c0_89 = arith.constant 0 : index
    %c0_90 = arith.constant 0 : index
    %117 = vector.load %arg5[%c4, %c0_89, %c0_90] : memref<9x128x128xbf16, #tpu.memory_space<vmem>>, vector<1x128x128xbf16>
    %118 = vector.shape_cast %117 : vector<1x128x128xbf16> to vector<128x128xbf16>
    %cst_91 = arith.constant dense<0.000000e+00> : vector<32x128xf32>
    %119 = tpu.matmul %115, %118, %cst_91 {dimension_numbers = #tpu.dot_dimension_numbers<[1], [0], [0], [1], [0, 0, 1, 1], [], []>} : vector<32x128xbf16>, vector<128x128xbf16>, vector<32x128xf32> -> vector<32x128xf32>
    %120 = arith.addf %116, %119 : vector<32x128xf32>
    %c0_92 = arith.constant 0 : index
    %c0_93 = arith.constant 0 : index
    %121 = vector.load %arg9[%c0_92, %c0_93] : memref<32x128xf32, #tpu.memory_space<vmem>>, vector<32x128xf32>
    tpu.vector_store %arg9[%c0_92, %c0_93], %120 {strides = array<i32>} : memref<32x128xf32, #tpu.memory_space<vmem>>, vector<32x128xf32>,
    %c2_94 = arith.constant 2 : index
    %c8_95 = arith.constant 8 : index
    %c0_96 = arith.constant 0 : index
    %122 = vector.load %arg8[%c2_94, %c8_95, %c0_96] : memref<3x48x128xf32, #tpu.memory_space<vmem>>, vector<1x32x128xf32>
    %123 = vector.shape_cast %122 : vector<1x32x128xf32> to vector<32x128xf32>
    %124 = arith.truncf %123 : vector<32x128xf32> to vector<32x128xbf16>
    %c0_97 = arith.constant 0 : index
    %c0_98 = arith.constant 0 : index
    %125 = vector.load %arg9[%c0_97, %c0_98] : memref<32x128xf32, #tpu.memory_space<vmem>>, vector<32x128xf32>
    %c5 = arith.constant 5 : index
    %c0_99 = arith.constant 0 : index
    %c0_100 = arith.constant 0 : index
    %126 = vector.load %arg5[%c5, %c0_99, %c0_100] : memref<9x128x128xbf16, #tpu.memory_space<vmem>>, vector<1x128x128xbf16>
    %127 = vector.shape_cast %126 : vector<1x128x128xbf16> to vector<128x128xbf16>
    %cst_101 = arith.constant dense<0.000000e+00> : vector<32x128xf32>
    %128 = tpu.matmul %124, %127, %cst_101 {dimension_numbers = #tpu.dot_dimension_numbers<[1], [0], [0], [1], [0, 0, 1, 1], [], []>} : vector<32x128xbf16>, vector<128x128xbf16>, vector<32x128xf32> -> vector<32x128xf32>
    %129 = arith.addf %125, %128 : vector<32x128xf32>
    %c0_102 = arith.constant 0 : index
    %c0_103 = arith.constant 0 : index
    %130 = vector.load %arg9[%c0_102, %c0_103] : memref<32x128xf32, #tpu.memory_space<vmem>>, vector<32x128xf32>
    tpu.vector_store %arg9[%c0_102, %c0_103], %129 {strides = array<i32>} : memref<32x128xf32, #tpu.memory_space<vmem>>, vector<32x128xf32>,
    %c0_104 = arith.constant 0 : index
    %c16 = arith.constant 16 : index
    %c0_105 = arith.constant 0 : index
    %131 = vector.load %arg8[%c0_104, %c16, %c0_105] : memref<3x48x128xf32, #tpu.memory_space<vmem>>, vector<1x32x128xf32>
    %132 = vector.shape_cast %131 : vector<1x32x128xf32> to vector<32x128xf32>
    %133 = arith.truncf %132 : vector<32x128xf32> to vector<32x128xbf16>
    %c0_106 = arith.constant 0 : index
    %c0_107 = arith.constant 0 : index
    %134 = vector.load %arg9[%c0_106, %c0_107] : memref<32x128xf32, #tpu.memory_space<vmem>>, vector<32x128xf32>
    %c6 = arith.constant 6 : index
    %c0_108 = arith.constant 0 : index
    %c0_109 = arith.constant 0 : index
    %135 = vector.load %arg5[%c6, %c0_108, %c0_109] : memref<9x128x128xbf16, #tpu.memory_space<vmem>>, vector<1x128x128xbf16>
    %136 = vector.shape_cast %135 : vector<1x128x128xbf16> to vector<128x128xbf16>
    %cst_110 = arith.constant dense<0.000000e+00> : vector<32x128xf32>
    %137 = tpu.matmul %133, %136, %cst_110 {dimension_numbers = #tpu.dot_dimension_numbers<[1], [0], [0], [1], [0, 0, 1, 1], [], []>} : vector<32x128xbf16>, vector<128x128xbf16>, vector<32x128xf32> -> vector<32x128xf32>
    %138 = arith.addf %134, %137 : vector<32x128xf32>
    %c0_111 = arith.constant 0 : index
    %c0_112 = arith.constant 0 : index
    %139 = vector.load %arg9[%c0_111, %c0_112] : memref<32x128xf32, #tpu.memory_space<vmem>>, vector<32x128xf32>
    tpu.vector_store %arg9[%c0_111, %c0_112], %138 {strides = array<i32>} : memref<32x128xf32, #tpu.memory_space<vmem>>, vector<32x128xf32>,
    %c1_113 = arith.constant 1 : index
    %c16_114 = arith.constant 16 : index
    %c0_115 = arith.constant 0 : index
    %140 = vector.load %arg8[%c1_113, %c16_114, %c0_115] : memref<3x48x128xf32, #tpu.memory_space<vmem>>, vector<1x32x128xf32>
    %141 = vector.shape_cast %140 : vector<1x32x128xf32> to vector<32x128xf32>
    %142 = arith.truncf %141 : vector<32x128xf32> to vector<32x128xbf16>
    %c0_116 = arith.constant 0 : index
    %c0_117 = arith.constant 0 : index
    %143 = vector.load %arg9[%c0_116, %c0_117] : memref<32x128xf32, #tpu.memory_space<vmem>>, vector<32x128xf32>
    %c7 = arith.constant 7 : index
    %c0_118 = arith.constant 0 : index
    %c0_119 = arith.constant 0 : index
    %144 = vector.load %arg5[%c7, %c0_118, %c0_119] : memref<9x128x128xbf16, #tpu.memory_space<vmem>>, vector<1x128x128xbf16>
    %145 = vector.shape_cast %144 : vector<1x128x128xbf16> to vector<128x128xbf16>
    %cst_120 = arith.constant dense<0.000000e+00> : vector<32x128xf32>
    %146 = tpu.matmul %142, %145, %cst_120 {dimension_numbers = #tpu.dot_dimension_numbers<[1], [0], [0], [1], [0, 0, 1, 1], [], []>} : vector<32x128xbf16>, vector<128x128xbf16>, vector<32x128xf32> -> vector<32x128xf32>
    %147 = arith.addf %143, %146 : vector<32x128xf32>
    %c0_121 = arith.constant 0 : index
    %c0_122 = arith.constant 0 : index
    %148 = vector.load %arg9[%c0_121, %c0_122] : memref<32x128xf32, #tpu.memory_space<vmem>>, vector<32x128xf32>
    tpu.vector_store %arg9[%c0_121, %c0_122], %147 {strides = array<i32>} : memref<32x128xf32, #tpu.memory_space<vmem>>, vector<32x128xf32>,
    %c2_123 = arith.constant 2 : index
    %c16_124 = arith.constant 16 : index
    %c0_125 = arith.constant 0 : index
    %149 = vector.load %arg8[%c2_123, %c16_124, %c0_125] : memref<3x48x128xf32, #tpu.memory_space<vmem>>, vector<1x32x128xf32>
    %150 = vector.shape_cast %149 : vector<1x32x128xf32> to vector<32x128xf32>
    %151 = arith.truncf %150 : vector<32x128xf32> to vector<32x128xbf16>
    %c0_126 = arith.constant 0 : index
    %c0_127 = arith.constant 0 : index
    %152 = vector.load %arg9[%c0_126, %c0_127] : memref<32x128xf32, #tpu.memory_space<vmem>>, vector<32x128xf32>
    %c8_128 = arith.constant 8 : index
    %c0_129 = arith.constant 0 : index
    %c0_130 = arith.constant 0 : index
    %153 = vector.load %arg5[%c8_128, %c0_129, %c0_130] : memref<9x128x128xbf16, #tpu.memory_space<vmem>>, vector<1x128x128xbf16>
    %154 = vector.shape_cast %153 : vector<1x128x128xbf16> to vector<128x128xbf16>
    %cst_131 = arith.constant dense<0.000000e+00> : vector<32x128xf32>
    %155 = tpu.matmul %151, %154, %cst_131 {dimension_numbers = #tpu.dot_dimension_numbers<[1], [0], [0], [1], [0, 0, 1, 1], [], []>} : vector<32x128xbf16>, vector<128x128xbf16>, vector<32x128xf32> -> vector<32x128xf32>
    %156 = arith.addf %152, %155 : vector<32x128xf32>
    %c0_132 = arith.constant 0 : index
    %c0_133 = arith.constant 0 : index
    %157 = vector.load %arg9[%c0_132, %c0_133] : memref<32x128xf32, #tpu.memory_space<vmem>>, vector<32x128xf32>
    tpu.vector_store %arg9[%c0_132, %c0_133], %156 {strides = array<i32>} : memref<32x128xf32, #tpu.memory_space<vmem>>, vector<32x128xf32>,
    %c0_134 = arith.constant 0 : index
    %c0_135 = arith.constant 0 : index
    %158 = vector.load %arg6[%c0_134, %c0_135] : memref<2x128xf32, #tpu.memory_space<vmem>>, vector<1x128xf32>
    %c1_136 = arith.constant 1 : index
    %c0_137 = arith.constant 0 : index
    %159 = vector.load %arg6[%c1_136, %c0_137] : memref<2x128xf32, #tpu.memory_space<vmem>>, vector<1x128xf32>
    %c0_138 = arith.constant 0 : index
    %c0_139 = arith.constant 0 : index
    %160 = vector.load %arg9[%c0_138, %c0_139] : memref<32x128xf32, #tpu.memory_space<vmem>>, vector<32x128xf32>
    %161 = vector.broadcast %158 : vector<1x128xf32> to vector<32x128xf32>
    %162 = arith.mulf %160, %161 : vector<32x128xf32>
    %163 = vector.broadcast %159 : vector<1x128xf32> to vector<32x128xf32>
    %164 = arith.addf %162, %163 : vector<32x128xf32>
    %c0_140 = arith.constant 0 : index
    %c0_141 = arith.constant 0 : index
    %c0_142 = arith.constant 0 : index
    %165 = vector.load %arg2[%c0_140, %c0_141, %c0_142] : memref<1x32x128xf32, #tpu.memory_space<vmem>>, vector<1x32x128xf32>
    %166 = vector.shape_cast %165 : vector<1x32x128xf32> to vector<32x128xf32>
    %167 = arith.addf %164, %166 : vector<32x128xf32>
    %cst_143 = arith.constant 0.000000e+00 : f32
    %168 = vector.broadcast %cst_143 : f32 to vector<32x128xf32>
    %169 = arith.maximumf %167, %168 : vector<32x128xf32>
    %c0_144 = arith.constant 0 : index
    %c0_145 = arith.constant 0 : index
    %c0_146 = arith.constant 0 : index
    %170 = vector.load %arg7[%c0_144, %c0_145, %c0_146] : memref<1x32x128xf32, #tpu.memory_space<vmem>>, vector<1x32x128xf32>
    %171 = vector.shape_cast %170 : vector<1x32x128xf32> to vector<32x128xf32>
    %172 = vector.shape_cast %169 : vector<32x128xf32> to vector<1x32x128xf32>
    tpu.vector_store %arg7[%c0_144, %c0_145, %c0_146], %172 {strides = array<i32>} : memref<1x32x128xf32, #tpu.memory_space<vmem>>, vector<1x32x128xf32>,
    return
  }
  func.func @transform_0(%arg0: i32, %arg1: i32) -> (i32, i32, i32) {
    %c0_i32 = arith.constant 0 : i32
    %c0_i32_0 = arith.constant 0 : i32
    return %arg0, %arg1, %c0_i32 : i32, i32, i32
  }
  func.func @transform_1(%arg0: i32, %arg1: i32) -> (i32, i32, i32) {
    %c4_i32 = arith.constant 4 : i32
    %0 = arith.muli %arg1, %c4_i32 : i32
    %c1_i32 = arith.constant 1 : i32
    %1 = arith.subi %0, %c1_i32 : i32
    %c0_i32 = arith.constant 0 : i32
    %2 = arith.maxsi %1, %c0_i32 : i32
    %c0_i32_0 = arith.constant 0 : i32
    %c0_i32_1 = arith.constant 0 : i32
    return %arg0, %2, %c0_i32_0 : i32, i32, i32
  }
  func.func @transform_2(%arg0: i32, %arg1: i32) -> (i32, i32, i32) {
    %c4_i32 = arith.constant 4 : i32
    %0 = arith.muli %arg1, %c4_i32 : i32
    %c4_i32_0 = arith.constant 4 : i32
    %1 = arith.addi %0, %c4_i32_0 : i32
    %c7_i32 = arith.constant 7 : i32
    %2 = arith.minsi %1, %c7_i32 : i32
    %c0_i32 = arith.constant 0 : i32
    %c0_i32_1 = arith.constant 0 : i32
    return %arg0, %2, %c0_i32 : i32, i32, i32
  }
  func.func @transform_3(%arg0: i32, %arg1: i32) -> (i32, i32, i32) {
    %c0_i32 = arith.constant 0 : i32
    %c0_i32_0 = arith.constant 0 : i32
    %c0_i32_1 = arith.constant 0 : i32
    %c0_i32_2 = arith.constant 0 : i32
    return %c0_i32, %c0_i32_0, %c0_i32_1 : i32, i32, i32
  }
  func.func @transform_4(%arg0: i32, %arg1: i32) -> (i32, i32) {
    %c0_i32 = arith.constant 0 : i32
    %c0_i32_0 = arith.constant 0 : i32
    %c0_i32_1 = arith.constant 0 : i32
    return %c0_i32, %c0_i32_0 : i32, i32
  }
  func.func @transform_5(%arg0: i32, %arg1: i32) -> (i32, i32, i32) {
    %c0_i32 = arith.constant 0 : i32
    %c0_i32_0 = arith.constant 0 : i32
    return %arg0, %arg1, %c0_i32 : i32, i32, i32
  }
}

</mosaic_0001>

<llo_original>
// kernel: tpu_custom_call.1
$region0: #{tpu_custom_call.1}
  #allocation0 [shape = 'u32[]', space=smem, size = 0x4, offset = 0x4, fixed_abs, tag = 'smem constant byte address 0x4 - core index']
  #allocation1 [shape = 'u32[72,128]{1,0:T(1,128)}', space=vmem, size = 0x9000, scoped, tag = 'internal scratch']
  #allocation2 [shape = 'f32[3,48,128]{2,1,0:T(8,128)}', space=vmem, size = 0x12000, scoped, tag = 'scratch operand']
  #allocation3 [shape = 'f32[32,128]{1,0:T(8,128)}', space=vmem, size = 0x4000, scoped, tag = 'scratch operand']
  %s0 = inlined_call_operand.hbm [shape: f32[2,64,128], index: 0, kind: input, shape index: {}]
  %s1 = inlined_call_operand.hbm [shape: f32[2,64,128], index: 1, kind: input, shape index: {}]
  %s2 = inlined_call_operand.hbm [shape: f32[2,64,128], index: 2, kind: input, shape index: {}]
  %s3 = inlined_call_operand.hbm [shape: bf16[9,128,128], index: 3, kind: input, shape index: {}]
  %s4 = inlined_call_operand.vmem [shape: f32[2,128], index: 4, kind: input, shape index: {}]
  %s5 = inlined_call_operand.hbm [shape: f32[2,64,128], index: 5, kind: output, shape index: {}]
  %s6 = sld [smem:[#allocation0]]
  $region77: #{tpu_custom_call.1} parent=0
    _
  %s8 = ssub.s32 1, %s6
  %s9 = scalar_select 0, %s8, %s6
  $region1: #{tpu_custom_call.1} parent=0
    #allocation4 [shape = 'u8[32768]{0}', space=vmem, size = 0x8000, scoped, tag = 'input window, operand 0']
    #allocation5 [shape = 's32[2]{0}', space=sflag, size = 0x8, scoped, tag = 'scoped memory for tpu_custom_call.1']
    #allocation6 [shape = 's32[2]{0}', space=sflag, size = 0x8, scoped, tag = 'scoped memory for tpu_custom_call.1']
    #allocation7 [shape = 'u8[8192]{0}', space=vmem, size = 0x2000, scoped, tag = 'input window, operand 1']
    #allocation8 [shape = 's32[2]{0}', space=sflag, size = 0x8, scoped, tag = 'scoped memory for tpu_custom_call.1']
    #allocation9 [shape = 'u8[8192]{0}', space=vmem, size = 0x2000, scoped, tag = 'input window, operand 2']
    #allocation10 [shape = 'u8[294912]{0}', space=vmem, size = 0x48000, scoped, tag = 'input window, operand 3, single buffered']
    #allocation11 [shape = 's32[1]{0}', space=sflag, size = 0x4, scoped, tag = 'scoped memory for tpu_custom_call.1']
    #allocation12 [shape = 'u8[32768]{0}', space=vmem, size = 0x8000, scoped, tag = 'output window, operand 0']
    %10 = vsyncpa [#allocation5], 0
    %s11 = scalar_lea.sflag [#allocation5], 1
    %12 = vsyncpa %s11, 0
    %13 = vsyncpa [#allocation8], 0
    %s14 = scalar_lea.sflag [#allocation8], 1
    %15 = vsyncpa %s14, 0
    %16 = vsyncpa [#allocation11], 0
    %17 = vsyncpa [#allocation6], 0
    %s18 = scalar_lea.sflag [#allocation6], 1
    %19 = vsyncpa %s18, 0
    loop: start=0, step=1, limit=6
    $region2: #{tpu_custom_call.1} parent=1 // loop_pre_header
      _
    $region3: #{tpu_custom_call.1} parent=1 // loop_header
      %s21 = sphi 0, %s25
      %p22 = scmp.ge.s32.totalorder %s21, 6
      %s28 = sphi 0, %s40
      %s29 = sphi 0, %s36
      %s30 = sphi 0, %s28
      %s31 = sphi 0, %s29
      %s32 = sphi 0, %s30
      %s33 = sphi 0, %s31
      %s45 = sphi 0, %s47
      %s48 = sphi 0, %s45
      %s49 = sphi 0, %s48
      %s65 = sphi 0, %s49
      %s81 = sphi 0, %s83
      %s84 = sphi 0, %s81
      %s85 = sphi 0, %s84
      %s101 = sphi 0, %s85
      %s117 = sphi 0, %s119
      %s120 = sphi 0, %s117
      %s121 = sphi 0, %s120
      %s137 = sphi 0, %s121
      %s141 = sphi 0, %s141
      %s143 = sphi 0, %s141
      %s144 = sphi 0, %s143
      %s158 = sphi 0, %s144
      %s162 = sphi 0, %s162
      %s164 = sphi 0, %s162
      %s165 = sphi 0, %s164
      %s179 = sphi 0, %s165
      %s187 = sphi 0, %s189
      %s190 = sphi 0, %s187
      %s191 = sphi 0, %s190
      %s207 = sphi 0, %s191
    $region4: #{tpu_custom_call.1} parent=1 // loop_header_branch
      %24 = sbr.rel (%p22) target = $region8
    $region5: #{tpu_custom_call.1} parent=1 // loop_body
      %s26 = ssub.s32 %s21, 1
      %s27 = ssub.s32 %s21, 2
      %s34 = sadd.s32 1, %s29
      %p35 = scmp.ge.s32.totalorder %s34, 2
      %s36 = scalar_select %p35, 0, %s34
      %s37 = sadd.s32 1, %s28
      %s38 = scalar_select %p35, %s37, %s28
      %p39 = scmp.ge.s32.totalorder %s38, 2
      %s40 = scalar_select %p39, 0, %s38
      %s41 = ssub.s32 %s28, %s40
      %s42 = ssub.s32 %s29, %s36
      %s43 = sor.u32 %s41, %s42
      %p44 = scmp.eq.s32.totalorder %s43, 0
      %s46 = sadd.s32 %s45, 1
      %s47 = scalar_select %p44, %s45, %s46
      %p50 = pneg %p44
      %p51 = scmp.eq.s32.totalorder %s21, 3
      %p52 = por %p50, %p51
      %p53 = scmp.ne.s32.totalorder %s45, %s48
      %p54 = scmp.eq.s32.totalorder %s21, 0
      %p55 = por %p53, %p54
      %p56 = scmp.ne.s32.totalorder %s45, %s48
      %p57 = scmp.eq.s32.totalorder %s26, 3
      %p58 = por %p56, %p57
      %p59 = scmp.ne.s32.totalorder %s48, %s49
      %p60 = scmp.eq.s32.totalorder %s26, 0
      %p61 = por %p59, %p60
      %p62 = scmp.ne.s32.totalorder %s48, %s49
      %p63 = scmp.eq.s32.totalorder %s27, 3
      %p64 = por %p62, %p63
      %p66 = scmp.ne.s32.totalorder %s49, %s65
      %p67 = scmp.eq.s32.totalorder %s27, 0
      %p68 = por %p66, %p67
      %s69 = smul.u32 %s29, 4
      %s70 = ssub.s32 %s69, 1
      %p71 = scmp.gt.s32.totalorder %s70, 0
      %s72 = scalar_select %p71, %s70, 0
      %s73 = smul.u32 %s36, 4
      %s74 = ssub.s32 %s73, 1
      %p75 = scmp.gt.s32.totalorder %s74, 0
      %s76 = scalar_select %p75, %s74, 0
      %s77 = ssub.s32 %s28, %s40
      %s78 = ssub.s32 %s72, %s76
      %s79 = sor.u32 %s77, %s78
      %p80 = scmp.eq.s32.totalorder %s79, 0
      %s82 = sadd.s32 %s81, 1
      %s83 = scalar_select %p80, %s81, %s82
      %p86 = pneg %p80
      %p87 = scmp.eq.s32.totalorder %s21, 3
      %p88 = por %p86, %p87
      %p89 = scmp.ne.s32.totalorder %s81, %s84
      %p90 = scmp.eq.s32.totalorder %s21, 0
      %p91 = por %p89, %p90
      %p92 = scmp.ne.s32.totalorder %s81, %s84
      %p93 = scmp.eq.s32.totalorder %s26, 3
      %p94 = por %p92, %p93
      %p95 = scmp.ne.s32.totalorder %s84, %s85
      %p96 = scmp.eq.s32.totalorder %s26, 0
      %p97 = por %p95, %p96
      %p98 = scmp.ne.s32.totalorder %s84, %s85
      %p99 = scmp.eq.s32.totalorder %s27, 3
      %p100 = por %p98, %p99
      %p102 = scmp.ne.s32.totalorder %s85, %s101
      %p103 = scmp.eq.s32.totalorder %s27, 0
      %p104 = por %p102, %p103
      %s105 = smul.u32 %s29, 4
      %s106 = sadd.s32 %s105, 4
      %p107 = scmp.lt.s32.totalorder %s106, 7
      %s108 = scalar_select %p107, %s106, 7
      %s109 = smul.u32 %s36, 4
      %s110 = sadd.s32 %s109, 4
      %p111 = scmp.lt.s32.totalorder %s110, 7
      %s112 = scalar_select %p111, %s110, 7
      %s113 = ssub.s32 %s28, %s40
      %s114 = ssub.s32 %s108, %s112
      %s115 = sor.u32 %s113, %s114
      %p116 = scmp.eq.s32.totalorder %s115, 0
      %s118 = sadd.s32 %s117, 1
      %s119 = scalar_select %p116, %s117, %s118
      %p122 = pneg %p116
      %p123 = scmp.eq.s32.totalorder %s21, 3
      %p124 = por %p122, %p123
      %p125 = scmp.ne.s32.totalorder %s117, %s120
      %p126 = scmp.eq.s32.totalorder %s21, 0
      %p127 = por %p125, %p126
      %p128 = scmp.ne.s32.totalorder %s117, %s120
      %p129 = scmp.eq.s32.totalorder %s26, 3
      %p130 = por %p128, %p129
      %p131 = scmp.ne.s32.totalorder %s120, %s121
      %p132 = scmp.eq.s32.totalorder %s26, 0
      %p133 = por %p131, %p132
      %p134 = scmp.ne.s32.totalorder %s120, %s121
      %p135 = scmp.eq.s32.totalorder %s27, 3
      %p136 = por %p134, %p135
      %p138 = scmp.ne.s32.totalorder %s121, %s137
      %p139 = scmp.eq.s32.totalorder %s27, 0
      %p140 = por %p138, %p139
      %s142 = sadd.s32 %s141, 1
      %p145 = scmp.eq.s32.totalorder %s21, 3
      %p146 = scmp.ne.s32.totalorder %s141, %s143
      %p147 = scmp.eq.s32.totalorder %s21, 0
      %p148 = por %p146, %p147
      %p149 = scmp.ne.s32.totalorder %s141, %s143
      %p150 = scmp.eq.s32.totalorder %s26, 3
      %p151 = por %p149, %p150
      %p152 = scmp.ne.s32.totalorder %s143, %s144
      %p153 = scmp.eq.s32.totalorder %s26, 0
      %p154 = por %p152, %p153
      %p155 = scmp.ne.s32.totalorder %s143, %s144
      %p156 = scmp.eq.s32.totalorder %s27, 3
      %p157 = por %p155, %p156
      %p159 = scmp.ne.s32.totalorder %s144, %s158
      %p160 = scmp.eq.s32.totalorder %s27, 0
      %p161 = por %p159, %p160
      %s163 = sadd.s32 %s162, 1
      %p166 = scmp.eq.s32.totalorder %s21, 3
      %p167 = scmp.ne.s32.totalorder %s162, %s164
      %p168 = scmp.eq.s32.totalorder %s21, 0
      %p169 = por %p167, %p168
      %p170 = scmp.ne.s32.totalorder %s162, %s164
      %p171 = scmp.eq.s32.totalorder %s26, 3
      %p172 = por %p170, %p171
      %p173 = scmp.ne.s32.totalorder %s164, %s165
      %p174 = scmp.eq.s32.totalorder %s26, 0
      %p175 = por %p173, %p174
      %p176 = scmp.ne.s32.totalorder %s164, %s165
      %p177 = scmp.eq.s32.totalorder %s27, 3
      %p178 = por %p176, %p177
      %p180 = scmp.ne.s32.totalorder %s165, %s179
      %p181 = scmp.eq.s32.totalorder %s27, 0
      %p182 = por %p180, %p181
      %s183 = ssub.s32 %s28, %s40
      %s184 = ssub.s32 %s29, %s36
      %s185 = sor.u32 %s183, %s184
      %p186 = scmp.eq.s32.totalorder %s185, 0
      %s188 = sadd.s32 %s187, 1
      %s189 = scalar_select %p186, %s187, %s188
      %p192 = pneg %p186
      %p193 = scmp.eq.s32.totalorder %s21, 3
      %p194 = por %p192, %p193
      %p195 = scmp.ne.s32.totalorder %s187, %s190
      %p196 = scmp.eq.s32.totalorder %s21, 0
      %p197 = por %p195, %p196
      %p198 = scmp.ne.s32.totalorder %s187, %s190
      %p199 = scmp.eq.s32.totalorder %s26, 3
      %p200 = por %p198, %p199
      %p201 = scmp.ne.s32.totalorder %s190, %s191
      %p202 = scmp.eq.s32.totalorder %s26, 0
      %p203 = por %p201, %p202
      %p204 = scmp.ne.s32.totalorder %s190, %s191
      %p205 = scmp.eq.s32.totalorder %s27, 3
      %p206 = por %p204, %p205
      %p208 = scmp.ne.s32.totalorder %s191, %s207
      %p209 = scmp.eq.s32.totalorder %s27, 0
      %p210 = por %p208, %p209
      %p211 = scmp.le.s32.totalorder 1, %s21
      %p212 = scmp.lt.s32.totalorder %s21, 5
      %p213 = pnand %p211, %p212
      %p214 = pneg %p213
      // Predicated region
      $region9: #{tpu_custom_call.1} parent=5 // pred_check
        _
      $region10: #{tpu_custom_call.1} parent=5 // pred_check_branch
        %216 = sbr.rel (%p213) target = $region12
      $region11: #{tpu_custom_call.1} parent=5 // pred_region
        %s217 = ssub.s32 %s21, 1
        // Predicated region
        $region13: #{tpu_custom_call.1} parent=11 // pred_check
          %p218 = pneg %p154
        $region14: #{tpu_custom_call.1} parent=11 // pred_check_branch
          %220 = sbr.rel (%p218) target = $region16
        $region15: #{tpu_custom_call.1} parent=11 // pred_region
          %222 = vsyncadd [#allocation11], 0
          %s223 = sshll.u32 %s3, 4
          %s224 = int_to_ptr.hbm [resolvable:$true] %s223
          %s225 = sshll.u32 [#allocation10], 4
          %s226 = int_to_ptr.vmem [resolvable:$true] %s225
          %231 = dma.hbm_to_vmem [thread:$0]  %s224, 9216, %s226, [#allocation11], 64, 64, 4
        $region16: #{tpu_custom_call.1} parent=11 // pred_fallthru
          _
        // Predicated region
        $region17: #{tpu_custom_call.1} parent=11 // pred_check
          %p232 = pneg %p175
        $region18: #{tpu_custom_call.1} parent=11 // pred_check_branch
          %234 = sbr.rel (%p232) target = $region20
        $region19: #{tpu_custom_call.1} parent=11 // pred_region
          _
        $region20: #{tpu_custom_call.1} parent=11 // pred_fallthru
          _
      $region12: #{tpu_custom_call.1} parent=5 // pred_fallthru
        _
      %p235 = scmp.lt.s32.totalorder %s21, 4
      // Predicated region
      $region21: #{tpu_custom_call.1} parent=5 // pred_check
        %p236 = pneg %p235
      $region22: #{tpu_custom_call.1} parent=5 // pred_check_branch
        %238 = sbr.rel (%p236) target = $region24
      $region23: #{tpu_custom_call.1} parent=5 // pred_region
        // Predicated region
        $region25: #{tpu_custom_call.1} parent=23 // pred_check
          %p239 = pneg %p55
        $region26: #{tpu_custom_call.1} parent=23 // pred_check_branch
          %241 = sbr.rel (%p239) target = $region28
        $region27: #{tpu_custom_call.1} parent=23 // pred_region
          %s242 = sand.u32 %s45, 1
          %s243 = scalar_lea.sflag [#allocation5], %s242
          %s244 = sand.u32 %s45, 1
          %s245 = smul.addr %s244, 32
          %s246 = scalar_lea.vmem [#allocation4], %s245
          %s247 = smul.u32 4, %s29
          %249 = vsyncadd %s243, 0
          %s250 = smul.addr %s28, 8
          %s251 = sadd.s32 %s247, %s250
          %s252 = smul.addr %s251, 8
          %s253 = scalar_lea.hbm %s0, %s252
          %s254 = sshll.u32 %s253, 4
          %s255 = int_to_ptr.hbm [resolvable:$true] %s254
          %s256 = sshll.u32 %s246, 4
          %s257 = int_to_ptr.vmem [resolvable:$true] %s256
          %262 = dma.hbm_to_vmem [thread:$0]  %s255, 512, %s257, %s243, 128, 128, 8
        $region28: #{tpu_custom_call.1} parent=23 // pred_fallthru
          _
        // Predicated region
        $region29: #{tpu_custom_call.1} parent=23 // pred_check
          %p263 = pneg %p91
        $region30: #{tpu_custom_call.1} parent=23 // pred_check_branch
          %265 = sbr.rel (%p263) target = $region32
        $region31: #{tpu_custom_call.1} parent=23 // pred_region
          %s266 = sand.u32 %s21, 1
          %s267 = scalar_lea.sflag [#allocation8], %s266
          %s268 = sand.u32 %s81, 1
          %s269 = smul.addr %s268, 8
          %s270 = scalar_lea.vmem [#allocation7], %s269
          %s271 = smul.u32 %s29, 4
          %s272 = ssub.s32 %s271, 1
          %p273 = scmp.gt.s32.totalorder %s272, 0
          %s274 = scalar_select %p273, %s272, 0
          %276 = vsyncadd %s267, 0
          %s277 = smul.addr %s28, 8
          %s278 = sadd.s32 %s274, %s277
          %s279 = smul.addr %s278, 8
          %s280 = scalar_lea.hbm %s1, %s279
          %s282 = sshll.u32 %s280, 4
          %s283 = int_to_ptr.hbm [resolvable:$true] %s282
          %s284 = sshll.u32 %s270, 4
          %s285 = int_to_ptr.vmem [resolvable:$true] %s284
          %287 = dma.hbm_to_vmem [thread:$0]  %s283, 128, %s285, %s267
        $region32: #{tpu_custom_call.1} parent=23 // pred_fallthru
          _
        // Predicated region
        $region33: #{tpu_custom_call.1} parent=23 // pred_check
          %p288 = pneg %p127
        $region34: #{tpu_custom_call.1} parent=23 // pred_check_branch
          %290 = sbr.rel (%p288) target = $region36
        $region35: #{tpu_custom_call.1} parent=23 // pred_region
          %s291 = sand.u32 %s21, 1
          %s292 = scalar_lea.sflag [#allocation8], %s291
          %s293 = sand.u32 %s117, 1
          %s294 = smul.addr %s293, 8
          %s295 = scalar_lea.vmem [#allocation9], %s294
          %s296 = smul.u32 %s29, 4
          %s297 = sadd.s32 %s296, 4
          %p298 = scmp.lt.s32.totalorder %s297, 7
          %s299 = scalar_select %p298, %s297, 7
          %301 = vsyncadd %s292, 0
          %s302 = smul.addr %s28, 8
          %s303 = sadd.s32 %s299, %s302
          %s304 = smul.addr %s303, 8
          %s305 = scalar_lea.hbm %s2, %s304
          %s307 = sshll.u32 %s305, 4
          %s308 = int_to_ptr.hbm [resolvable:$true] %s307
          %s309 = sshll.u32 %s295, 4
          %s310 = int_to_ptr.vmem [resolvable:$true] %s309
          %312 = dma.hbm_to_vmem [thread:$0]  %s308, 128, %s310, %s292
        $region36: #{tpu_custom_call.1} parent=23 // pred_fallthru
          _
      $region24: #{tpu_custom_call.1} parent=5 // pred_fallthru
        _
      %p313 = scmp.le.s32.totalorder 1, %s21
      %p314 = scmp.lt.s32.totalorder %s21, 5
      %p315 = pnand %p313, %p314
      %p316 = pneg %p315
      // Predicated region
      $region37: #{tpu_custom_call.1} parent=5 // pred_check
        _
      $region38: #{tpu_custom_call.1} parent=5 // pred_check_branch
        %318 = sbr.rel (%p315) target = $region40
      $region39: #{tpu_custom_call.1} parent=5 // pred_region
        %s319 = ssub.s32 %s21, 1
        %s320 = sand.u32 %s48, 1
        %s321 = scalar_lea.sflag [#allocation5], %s320
        %s322 = sand.u32 %s48, 1
        %s323 = smul.addr %s322, 32
        %s324 = scalar_lea.vmem [#allocation4], %s323
        // Predicated region
        $region41: #{tpu_custom_call.1} parent=39 // pred_check
          %p325 = pneg %p61
        $region42: #{tpu_custom_call.1} parent=39 // pred_check_branch
          %327 = sbr.rel (%p325) target = $region44
        $region43: #{tpu_custom_call.1} parent=39 // pred_region
          %329 = dma.done %s321, 512
        $region44: #{tpu_custom_call.1} parent=39 // pred_fallthru
          _
        %s330 = sand.u32 %s26, 1
        %s331 = scalar_lea.sflag [#allocation8], %s330
        %s332 = sand.u32 %s84, 1
        %s333 = smul.addr %s332, 8
        %s334 = scalar_lea.vmem [#allocation7], %s333
        // Predicated region
        $region45: #{tpu_custom_call.1} parent=39 // pred_check
          %p335 = pneg %p97
        $region46: #{tpu_custom_call.1} parent=39 // pred_check_branch
          %337 = sbr.rel (%p335) target = $region48
        $region47: #{tpu_custom_call.1} parent=39 // pred_region
          %339 = dma.done %s331, 128
        $region48: #{tpu_custom_call.1} parent=39 // pred_fallthru
          _
        %s340 = sand.u32 %s26, 1
        %s341 = scalar_lea.sflag [#allocation8], %s340
        %s342 = sand.u32 %s120, 1
        %s343 = smul.addr %s342, 8
        %s344 = scalar_lea.vmem [#allocation9], %s343
        // Predicated region
        $region49: #{tpu_custom_call.1} parent=39 // pred_check
          %p345 = pneg %p133
        $region50: #{tpu_custom_call.1} parent=39 // pred_check_branch
          %347 = sbr.rel (%p345) target = $region52
        $region51: #{tpu_custom_call.1} parent=39 // pred_region
          %349 = dma.done %s341, 128
        $region52: #{tpu_custom_call.1} parent=39 // pred_fallthru
          _
        // Predicated region
        $region53: #{tpu_custom_call.1} parent=39 // pred_check
          %p350 = pneg %p154
        $region54: #{tpu_custom_call.1} parent=39 // pred_check_branch
          %352 = sbr.rel (%p350) target = $region56
        $region55: #{tpu_custom_call.1} parent=39 // pred_region
          %354 = dma.done [#allocation11], 9216
        $region56: #{tpu_custom_call.1} parent=39 // pred_fallthru
          _
        %s355 = sand.u32 %s48, 1
        %s356 = scalar_lea.sflag [#allocation5], %s355
        %s357 = sand.u32 %s48, 1
        %s358 = smul.addr %s357, 32
        %s359 = scalar_lea.vmem [#allocation4], %s358
        %p360 = pneg %p61
        %p361 = pneg %p58
        %s362 = sand.u32 %s26, 1
        %s363 = scalar_lea.sflag [#allocation8], %s362
        %s364 = sand.u32 %s84, 1
        %s365 = smul.addr %s364, 8
        %s366 = scalar_lea.vmem [#allocation7], %s365
        %p367 = pneg %p97
        %p368 = pneg %p94
        %s369 = sand.u32 %s26, 1
        %s370 = scalar_lea.sflag [#allocation8], %s369
        %s371 = sand.u32 %s120, 1
        %s372 = smul.addr %s371, 8
        %s373 = scalar_lea.vmem [#allocation9], %s372
        %p374 = pneg %p133
        %p375 = pneg %p130
        %p376 = pneg %p154
        %p377 = pneg %p151
        %p378 = pneg %p175
        %p379 = pneg %p172
        %p380 = pneg %p203
        %p381 = pneg %p200
        %s382 = sand.u32 %s190, 1
        %s383 = scalar_lea.sflag [#allocation6], %s382
        %s384 = sand.u32 %s190, 1
        %s385 = smul.addr %s384, 32
        %s386 = scalar_lea.vmem [#allocation12], %s385
        %s387 = smul.u32 4, %s31
        %s388 = smul.u32 %s31, 4
        %s389 = ssub.s32 %s388, 1
        %p390 = scmp.gt.s32.totalorder %s389, 0
        %s391 = scalar_select %p390, %s389, 0
        %s392 = smul.u32 %s31, 4
        %s393 = sadd.s32 %s392, 4
        %p394 = scmp.lt.s32.totalorder %s393, 7
        %s395 = scalar_select %p394, %s393, 7
        %s396 = smul.u32 4, %s31
        %v397 = vld [vmem:[%s324] sm:$0xff]
        %v398 = vld [vmem:[%s324 + $0x8] sm:$0xff]
        %v399 = vld [vmem:[%s324 + $0x10] sm:$0xff]
        %v400 = vld [vmem:[%s324 + $0x18] sm:$0xff]
        %s401 = scalar_lea.vmem [#allocation2], 48
        %402 = vst [vmem:[%s401 + $0x8] sm:$0xff] %v397
        %403 = vst [vmem:[%s401 + $0x10] sm:$0xff] %v398
        %404 = vst [vmem:[%s401 + $0x18] sm:$0xff] %v399
        %405 = vst [vmem:[%s401 + $0x20] sm:$0xff] %v400
        %v406 = vld [vmem:[%s334] sm:$0xff]
        %407 = vst [vmem:[%s401] sm:$0xff] %v406
        %v408 = vld [vmem:[%s344] sm:$0xff]
        %409 = vst [vmem:[%s401 + $0x28] sm:$0xff] %v408
        %p410 = scmp.eq.s32.totalorder %s31, 0
        // Predicated region
        $region57: #{tpu_custom_call.1} parent=39 // pred_check
          %p411 = pneg %p410
        $region58: #{tpu_custom_call.1} parent=39 // pred_check_branch
          %413 = sbr.rel (%p411) target = $region60
        $region59: #{tpu_custom_call.1} parent=39 // pred_region
          %414 = vst [vmem:[%s401] sm:$0xff] 0.0
        $region60: #{tpu_custom_call.1} parent=39 // pred_fallthru
          _
        %p415 = scmp.eq.s32.totalorder %s31, 1
        // Predicated region
        $region61: #{tpu_custom_call.1} parent=39 // pred_check
          %p416 = pneg %p415
        $region62: #{tpu_custom_call.1} parent=39 // pred_check_branch
          %418 = sbr.rel (%p416) target = $region64
        $region63: #{tpu_custom_call.1} parent=39 // pred_region
          %419 = vst [vmem:[%s401 + $0x28] sm:$0xff] 0.0
        $region64: #{tpu_custom_call.1} parent=39 // pred_fallthru
          _
        %v420 = vld [vmem:[%s401] sm:$0xff]
        %v421 = vld [vmem:[%s401 + $0x8] sm:$0xff]
        %v422 = vld [vmem:[%s401 + $0x10] sm:$0xff]
        %v423 = vld [vmem:[%s401 + $0x18] sm:$0xff]
        %v424 = vld [vmem:[%s401 + $0x20] sm:$0xff]
        %v425 = vld [vmem:[%s401 + $0x28] sm:$0xff]
        %vm432 = vcmask 1040384
        %v433 = vrot.slane %v420, 7
        %v434 = vrot.slane %v421, 7
        %v435 = vsel %vm432, %v433, %v434
        %v436 = vrot.slane %v422, 7
        %v437 = vsel %vm432, %v434, %v436
        %v438 = vrot.slane %v423, 7
        %v439 = vsel %vm432, %v436, %v438
        %v440 = vrot.slane %v424, 7
        %v441 = vsel %vm432, %v438, %v440
        %v442 = vrot.slane %v425, 7
        %v443 = vsel %vm432, %v440, %v442
        %v450 = vsel %vm432, 0.0, %v433
        %vm451 = vcmask 1046528
        %v452 = vrot.slane %v420, 1
        %v453 = vrot.slane %v421, 1
        %v454 = vsel %vm451, %v452, %v453
        %v455 = vrot.slane %v422, 1
        %v456 = vsel %vm451, %v453, %v455
        %v457 = vrot.slane %v423, 1
        %v458 = vsel %vm451, %v455, %v457
        %v459 = vrot.slane %v424, 1
        %v460 = vsel %vm451, %v457, %v459
        %v461 = vrot.slane %v425, 1
        %v462 = vsel %vm451, %v459, %v461
        %v469 = vsel %vm451, %v461, 0.0
        %v470 = vlaneseq
        %v471 = vshrl.u32 %v470, 7
        %v472 = vadd.s32 %v471, 8
        %v473 = vadd.s32 %v471, 16
        %v474 = vadd.s32 %v471, 24
        %v475 = vadd.s32 %v471, 32
        %v476 = vadd.s32 %v471, 40
        %vm477 = vcmp.lt.s32.totalorder %v471, 0
        %v478 = vsub.s32 0, %v471
        %v479 = vsel %vm477, %v478, %v471
        %v480 = vshrl.u32 %v479, 3
        %v481 = vand.u32 %v479, 7
        %v482 = vsub.s32 0, %v481
        %v483 = vsel %vm477, %v482, %v481
        %vm484 = vcmp.lt.s32.totalorder %v472, 0
        %v485 = vsub.s32 0, %v472
        %v486 = vsel %vm484, %v485, %v472
        %v487 = vshrl.u32 %v486, 3
        %v488 = vand.u32 %v486, 7
        %v489 = vsub.s32 0, %v488
        %v490 = vsel %vm484, %v489, %v488
        %vm491 = vcmp.lt.s32.totalorder %v473, 0
        %v492 = vsub.s32 0, %v473
        %v493 = vsel %vm491, %v492, %v473
        %v494 = vshrl.u32 %v493, 3
        %v495 = vand.u32 %v493, 7
        %v496 = vsub.s32 0, %v495
        %v497 = vsel %vm491, %v496, %v495
        %vm498 = vcmp.lt.s32.totalorder %v474, 0
        %v499 = vsub.s32 0, %v474
        %v500 = vsel %vm498, %v499, %v474
        %v501 = vshrl.u32 %v500, 3
        %v502 = vand.u32 %v500, 7
        %v503 = vsub.s32 0, %v502
        %v504 = vsel %vm498, %v503, %v502
        %vm505 = vcmp.lt.s32.totalorder %v475, 0
        %v506 = vsub.s32 0, %v475
        %v507 = vsel %vm505, %v506, %v475
        %v508 = vshrl.u32 %v507, 3
        %v509 = vand.u32 %v507, 7
        %v510 = vsub.s32 0, %v509
        %v511 = vsel %vm505, %v510, %v509
        %vm512 = vcmp.lt.s32.totalorder %v476, 0
        %v513 = vsub.s32 0, %v476
        %v514 = vsel %vm512, %v513, %v476
        %v515 = vshrl.u32 %v514, 3
        %v516 = vand.u32 %v514, 7
        %v517 = vsub.s32 0, %v516
        %v518 = vsel %vm512, %v517, %v516
        %vm519 = vcmp.ne.s32.totalorder %v483, 0
        %vm520 = vcmp.ne.s32.totalorder %v490, 0
        %vm521 = vcmp.ne.s32.totalorder %v497, 0
        %vm522 = vcmp.ne.s32.totalorder %v504, 0
        %vm523 = vcmp.ne.s32.totalorder %v511, 0
        %vm524 = vcmp.ne.s32.totalorder %v518, 0
        %vm525 = vcmp.lt.s32.totalorder %v483, 0
        %vm526 = vcmp.lt.s32.totalorder %v490, 0
        %vm527 = vcmp.lt.s32.totalorder %v497, 0
        %vm528 = vcmp.lt.s32.totalorder %v504, 0
        %vm529 = vcmp.lt.s32.totalorder %v511, 0
        %vm530 = vcmp.lt.s32.totalorder %v518, 0
        %vm531 = vmand %vm525, %vm519
        %vm532 = vmand %vm526, %vm520
        %vm533 = vmand %vm527, %vm521
        %vm534 = vmand %vm528, %vm522
        %vm535 = vmand %vm529, %vm523
        %vm536 = vmand %vm530, %vm524
        %v537 = vadd.s32 %v483, 8
        %v538 = vadd.s32 %v490, 8
        %v539 = vadd.s32 %v497, 8
        %v540 = vadd.s32 %v504, 8
        %v541 = vadd.s32 %v511, 8
        %v542 = vadd.s32 %v518, 8
        %v543 = vsel %vm531, %v537, %v483
        %v544 = vsel %vm532, %v538, %v490
        %v545 = vsel %vm533, %v539, %v497
        %v546 = vsel %vm534, %v540, %v504
        %v547 = vsel %vm535, %v541, %v511
        %v548 = vsel %vm536, %v542, %v518
        %vm549 = vcmp.eq.s32.totalorder %v543, 0
        %vm550 = vcmp.eq.s32.totalorder %v544, 0
        %vm551 = vcmp.eq.s32.totalorder %v545, 0
        %vm552 = vcmp.eq.s32.totalorder %v546, 0
        %vm553 = vcmp.eq.s32.totalorder %v547, 0
        %vm554 = vcmp.eq.s32.totalorder %v548, 0
        %v555 = vsel %vm549, 0.0, %v450
        %v556 = vsel %vm550, 0.0, %v435
        %v557 = vsel %vm551, 0.0, %v437
        %v558 = vsel %vm552, 0.0, %v439
        %v559 = vsel %vm553, 0.0, %v441
        %v560 = vsel %vm554, 0.0, %v443
        %561 = vst [vmem:[#allocation2] sm:$0xff] %v555
        %562 = vst [vmem:[#allocation2 + $0x8] sm:$0xff] %v556
        %563 = vst [vmem:[#allocation2 + $0x10] sm:$0xff] %v557
        %564 = vst [vmem:[#allocation2 + $0x18] sm:$0xff] %v558
        %565 = vst [vmem:[#allocation2 + $0x20] sm:$0xff] %v559
        %566 = vst [vmem:[#allocation2 + $0x28] sm:$0xff] %v560
        %vm567 = vcmp.eq.s32.totalorder %v543, 7
        %vm568 = vcmp.eq.s32.totalorder %v544, 7
        %vm569 = vcmp.eq.s32.totalorder %v545, 7
        %vm570 = vcmp.eq.s32.totalorder %v546, 7
        %vm571 = vcmp.eq.s32.totalorder %v547, 7
        %vm572 = vcmp.eq.s32.totalorder %v548, 7
        %v573 = vsel %vm567, 0.0, %v454
        %v574 = vsel %vm568, 0.0, %v456
        %v575 = vsel %vm569, 0.0, %v458
        %v576 = vsel %vm570, 0.0, %v460
        %v577 = vsel %vm571, 0.0, %v462
        %v578 = vsel %vm572, 0.0, %v469
        %s579 = scalar_lea.vmem [#allocation2], 96
        %580 = vst [vmem:[%s579] sm:$0xff] %v573
        %581 = vst [vmem:[%s579 + $0x8] sm:$0xff] %v574
        %582 = vst [vmem:[%s579 + $0x10] sm:$0xff] %v575
        %583 = vst [vmem:[%s579 + $0x18] sm:$0xff] %v576
        %584 = vst [vmem:[%s579 + $0x20] sm:$0xff] %v577
        %585 = vst [vmem:[%s579 + $0x28] sm:$0xff] %v578
        %586 = vst [vmem:[#allocation3] sm:$0xff] 0.0
        %587 = vst [vmem:[#allocation3 + $0x8] sm:$0xff] 0.0
        %588 = vst [vmem:[#allocation3 + $0x10] sm:$0xff] 0.0
        %589 = vst [vmem:[#allocation3 + $0x18] sm:$0xff] 0.0
        %v590 = vld [vmem:[#allocation2] sm:$0xff]
        %v591 = vld [vmem:[#allocation2 + $0x8] sm:$0xff]
        %v592 = vld [vmem:[#allocation2 + $0x10] sm:$0xff]
        %v593 = vld [vmem:[#allocation2 + $0x18] sm:$0xff]
        %v594 = vpack.c.bf16 %v591, %v590
        %v595 = vpack.c.bf16 %v593, %v592
        %v596 = vld [vmem:[#allocation3] sm:$0xff]
        %v597 = vld [vmem:[#allocation3 + $0x8] sm:$0xff]
        %v598 = vld [vmem:[#allocation3 + $0x10] sm:$0xff]
        %v599 = vld [vmem:[#allocation3 + $0x18] sm:$0xff]
        %v600 = vld [vmem:[#allocation10] sm:$0xf]
        %v601 = vld [vmem:[#allocation10 + $0x4] sm:$0xf]
        %v602 = vld [vmem:[#allocation10 + $0x8] sm:$0xf]
        %v603 = vld [vmem:[#allocation10 + $0xc] sm:$0xf]
        %v604 = vld [vmem:[#allocation10 + $0x10] sm:$0xf]
        %v605 = vld [vmem:[#allocation10 + $0x14] sm:$0xf]
        %v606 = vld [vmem:[#allocation10 + $0x18] sm:$0xf]
        %v607 = vld [vmem:[#allocation10 + $0x1c] sm:$0xf]
        %v608 = vld [vmem:[#allocation10 + $0x20] sm:$0xf]
        %v609 = vld [vmem:[#allocation10 + $0x24] sm:$0xf]
        %v610 = vld [vmem:[#allocation10 + $0x28] sm:$0xf]
        %v611 = vld [vmem:[#allocation10 + $0x2c] sm:$0xf]
        %v612 = vld [vmem:[#allocation10 + $0x30] sm:$0xf]
        %v613 = vld [vmem:[#allocation10 + $0x34] sm:$0xf]
        %v614 = vld [vmem:[#allocation10 + $0x38] sm:$0xf]
        %v615 = vld [vmem:[#allocation10 + $0x3c] sm:$0xf]
        %v632 = vunpack.c.l.b16 %v600
        %v633 = vunpack.c.l.b16 %v601
        %v634 = vunpack.c.l.b16 %v602
        %v635 = vunpack.c.l.b16 %v603
        %v636 = vunpack.c.l.b16 %v604
        %v637 = vunpack.c.l.b16 %v605
        %v638 = vunpack.c.l.b16 %v606
        %v639 = vunpack.c.l.b16 %v607
        %v640 = vunpack.c.l.b16 %v608
        %v641 = vunpack.c.l.b16 %v609
        %v642 = vunpack.c.l.b16 %v610
        %v643 = vunpack.c.l.b16 %v611
        %v644 = vunpack.c.l.b16 %v612
        %v645 = vunpack.c.l.b16 %v613
        %v646 = vunpack.c.l.b16 %v614
        %v647 = vunpack.c.l.b16 %v615
        %v648 = vpack.c.b16 %v633, %v632
        %v649 = vpack.c.b16 %v635, %v634
        %v650 = vpack.c.b16 %v637, %v636
        %v651 = vpack.c.b16 %v639, %v638
        %v652 = vpack.c.b16 %v641, %v640
        %v653 = vpack.c.b16 %v643, %v642
        %v654 = vpack.c.b16 %v645, %v644
        %v655 = vpack.c.b16 %v647, %v646
        %664 = vmatpush.bf16.msra.mxu0 %v655
        %665 = vmatpush.bf16.msra.mxu0 %v654
        %666 = vmatpush.bf16.msra.mxu0 %v653
        %667 = vmatpush.bf16.msra.mxu0 %v652
        %668 = vmatpush.bf16.msra.mxu0 %v651
        %669 = vmatpush.bf16.msra.mxu0 %v650
        %670 = vmatpush.bf16.msra.mxu0 %v649
        %671 = vmatpush.bf16.msra.mxu0 %v648
        %672 = vmatmul.bf16.gmra.mxu0 %v594
        %v673 = vpop.f32.mrf.mxu0
        %v674 = vadd.f32 0.0, %v673
        %v675 = vpop.f32.mrf.mxu0
        %v676 = vadd.f32 0.0, %v675
        %677 = vmatmul.bf16.gmra.mxu0 %v595
        %v678 = vpop.f32.mrf.mxu0
        %v679 = vadd.f32 0.0, %v678
        %v680 = vpop.f32.mrf.mxu0
        %v681 = vadd.f32 0.0, %v680
        %682 = vdwg.mxu0
        %v683 = vadd.f32 %v596, %v674
        %v684 = vadd.f32 %v597, %v676
        %v685 = vadd.f32 %v598, %v679
        %v686 = vadd.f32 %v599, %v681
        %687 = vst [vmem:[#allocation3] sm:$0xff] %v683
        %688 = vst [vmem:[#allocation3 + $0x8] sm:$0xff] %v684
        %689 = vst [vmem:[#allocation3 + $0x10] sm:$0xff] %v685
        %690 = vst [vmem:[#allocation3 + $0x18] sm:$0xff] %v686
        %v691 = vld [vmem:[%s401] sm:$0xff]
        %v692 = vld [vmem:[%s401 + $0x8] sm:$0xff]
        %v693 = vld [vmem:[%s401 + $0x10] sm:$0xff]
        %v694 = vld [vmem:[%s401 + $0x18] sm:$0xff]
        %v695 = vpack.c.bf16 %v692, %v691
        %v696 = vpack.c.bf16 %v694, %v693
        %v697 = vld [vmem:[#allocation3] sm:$0xff]
        %v698 = vld [vmem:[#allocation3 + $0x8] sm:$0xff]
        %v699 = vld [vmem:[#allocation3 + $0x10] sm:$0xff]
        %v700 = vld [vmem:[#allocation3 + $0x18] sm:$0xff]
        %s701 = scalar_lea.vmem [#allocation10], 64
        %v702 = vld [vmem:[%s701] sm:$0xf]
        %v703 = vld [vmem:[%s701 + $0x4] sm:$0xf]
        %v704 = vld [vmem:[%s701 + $0x8] sm:$0xf]
        %v705 = vld [vmem:[%s701 + $0xc] sm:$0xf]
        %v706 = vld [vmem:[%s701 + $0x10] sm:$0xf]
        %v707 = vld [vmem:[%s701 + $0x14] sm:$0xf]
        %v708 = vld [vmem:[%s701 + $0x18] sm:$0xf]
        %v709 = vld [vmem:[%s701 + $0x1c] sm:$0xf]
        %v710 = vld [vmem:[%s701 + $0x20] sm:$0xf]
        %v711 = vld [vmem:[%s701 + $0x24] sm:$0xf]
        %v712 = vld [vmem:[%s701 + $0x28] sm:$0xf]
        %v713 = vld [vmem:[%s701 + $0x2c] sm:$0xf]
        %v714 = vld [vmem:[%s701 + $0x30] sm:$0xf]
        %v715 = vld [vmem:[%s701 + $0x34] sm:$0xf]
        %v716 = vld [vmem:[%s701 + $0x38] sm:$0xf]
        %v717 = vld [vmem:[%s701 + $0x3c] sm:$0xf]
        %v734 = vunpack.c.l.b16 %v702
        %v735 = vunpack.c.l.b16 %v703
        %v736 = vunpack.c.l.b16 %v704
        %v737 = vunpack.c.l.b16 %v705
        %v738 = vunpack.c.l.b16 %v706
        %v739 = vunpack.c.l.b16 %v707
        %v740 = vunpack.c.l.b16 %v708
        %v741 = vunpack.c.l.b16 %v709
        %v742 = vunpack.c.l.b16 %v710
        %v743 = vunpack.c.l.b16 %v711
        %v744 = vunpack.c.l.b16 %v712
        %v745 = vunpack.c.l.b16 %v713
        %v746 = vunpack.c.l.b16 %v714
        %v747 = vunpack.c.l.b16 %v715
        %v748 = vunpack.c.l.b16 %v716
        %v749 = vunpack.c.l.b16 %v717
        %v750 = vpack.c.b16 %v735, %v734
        %v751 = vpack.c.b16 %v737, %v736
        %v752 = vpack.c.b16 %v739, %v738
        %v753 = vpack.c.b16 %v741, %v740
        %v754 = vpack.c.b16 %v743, %v742
        %v755 = vpack.c.b16 %v745, %v744
        %v756 = vpack.c.b16 %v747, %v746
        %v757 = vpack.c.b16 %v749, %v748
        %766 = vmatpush.bf16.msra.mxu0 %v757
        %767 = vmatpush.bf16.msra.mxu0 %v756
        %768 = vmatpush.bf16.msra.mxu0 %v755
        %769 = vmatpush.bf16.msra.mxu0 %v754
        %770 = vmatpush.bf16.msra.mxu0 %v753
        %771 = vmatpush.bf16.msra.mxu0 %v752
        %772 = vmatpush.bf16.msra.mxu0 %v751
        %773 = vmatpush.bf16.msra.mxu0 %v750
        %774 = vmatmul.bf16.gmra.mxu0 %v695
        %v775 = vpop.f32.mrf.mxu0
        %v776 = vadd.f32 0.0, %v775
        %v777 = vpop.f32.mrf.mxu0
        %v778 = vadd.f32 0.0, %v777
        %779 = vmatmul.bf16.gmra.mxu0 %v696
        %v780 = vpop.f32.mrf.mxu0
        %v781 = vadd.f32 0.0, %v780
        %v782 = vpop.f32.mrf.mxu0
        %v783 = vadd.f32 0.0, %v782
        %784 = vdwg.mxu0
        %v785 = vadd.f32 %v697, %v776
        %v786 = vadd.f32 %v698, %v778
        %v787 = vadd.f32 %v699, %v781
        %v788 = vadd.f32 %v700, %v783
        %789 = vst [vmem:[#allocation3] sm:$0xff] %v785
        %790 = vst [vmem:[#allocation3 + $0x8] sm:$0xff] %v786
        %791 = vst [vmem:[#allocation3 + $0x10] sm:$0xff] %v787
        %792 = vst [vmem:[#allocation3 + $0x18] sm:$0xff] %v788
        %v793 = vld [vmem:[%s579] sm:$0xff]
        %v794 = vld [vmem:[%s579 + $0x8] sm:$0xff]
        %v795 = vld [vmem:[%s579 + $0x10] sm:$0xff]
        %v796 = vld [vmem:[%s579 + $0x18] sm:$0xff]
        %v797 = vpack.c.bf16 %v794, %v793
        %v798 = vpack.c.bf16 %v796, %v795
        %v799 = vld [vmem:[#allocation3] sm:$0xff]
        %v800 = vld [vmem:[#allocation3 + $0x8] sm:$0xff]
        %v801 = vld [vmem:[#allocation3 + $0x10] sm:$0xff]
        %v802 = vld [vmem:[#allocation3 + $0x18] sm:$0xff]
        %s803 = scalar_lea.vmem [#allocation10], 128
        %v804 = vld [vmem:[%s803] sm:$0xf]
        %v805 = vld [vmem:[%s803 + $0x4] sm:$0xf]
        %v806 = vld [vmem:[%s803 + $0x8] sm:$0xf]
        %v807 = vld [vmem:[%s803 + $0xc] sm:$0xf]
        %v808 = vld [vmem:[%s803 + $0x10] sm:$0xf]
        %v809 = vld [vmem:[%s803 + $0x14] sm:$0xf]
        %v810 = vld [vmem:[%s803 + $0x18] sm:$0xf]
        %v811 = vld [vmem:[%s803 + $0x1c] sm:$0xf]
        %v812 = vld [vmem:[%s803 + $0x20] sm:$0xf]
        %v813 = vld [vmem:[%s803 + $0x24] sm:$0xf]
        %v814 = vld [vmem:[%s803 + $0x28] sm:$0xf]
        %v815 = vld [vmem:[%s803 + $0x2c] sm:$0xf]
        %v816 = vld [vmem:[%s803 + $0x30] sm:$0xf]
        %v817 = vld [vmem:[%s803 + $0x34] sm:$0xf]
        %v818 = vld [vmem:[%s803 + $0x38] sm:$0xf]
        %v819 = vld [vmem:[%s803 + $0x3c] sm:$0xf]
        %v836 = vunpack.c.l.b16 %v804
        %v837 = vunpack.c.l.b16 %v805
        %v838 = vunpack.c.l.b16 %v806
        %v839 = vunpack.c.l.b16 %v807
        %v840 = vunpack.c.l.b16 %v808
        %v841 = vunpack.c.l.b16 %v809
        %v842 = vunpack.c.l.b16 %v810
        %v843 = vunpack.c.l.b16 %v811
        %v844 = vunpack.c.l.b16 %v812
        %v845 = vunpack.c.l.b16 %v813
        %v846 = vunpack.c.l.b16 %v814
        %v847 = vunpack.c.l.b16 %v815
        %v848 = vunpack.c.l.b16 %v816
        %v849 = vunpack.c.l.b16 %v817
        %v850 = vunpack.c.l.b16 %v818
        %v851 = vunpack.c.l.b16 %v819
        %v852 = vpack.c.b16 %v837, %v836
        %v853 = vpack.c.b16 %v839, %v838
        %v854 = vpack.c.b16 %v841, %v840
        %v855 = vpack.c.b16 %v843, %v842
        %v856 = vpack.c.b16 %v845, %v844
        %v857 = vpack.c.b16 %v847, %v846
        %v858 = vpack.c.b16 %v849, %v848
        %v859 = vpack.c.b16 %v851, %v850
        %868 = vmatpush.bf16.msra.mxu0 %v859
        %869 = vmatpush.bf16.msra.mxu0 %v858
        %870 = vmatpush.bf16.msra.mxu0 %v857
        %871 = vmatpush.bf16.msra.mxu0 %v856
        %872 = vmatpush.bf16.msra.mxu0 %v855
        %873 = vmatpush.bf16.msra.mxu0 %v854
        %874 = vmatpush.bf16.msra.mxu0 %v853
        %875 = vmatpush.bf16.msra.mxu0 %v852
        %876 = vmatmul.bf16.gmra.mxu0 %v797
        %v877 = vpop.f32.mrf.mxu0
        %v878 = vadd.f32 0.0, %v877
        %v879 = vpop.f32.mrf.mxu0
        %v880 = vadd.f32 0.0, %v879
        %881 = vmatmul.bf16.gmra.mxu0 %v798
        %v882 = vpop.f32.mrf.mxu0
        %v883 = vadd.f32 0.0, %v882
        %v884 = vpop.f32.mrf.mxu0
        %v885 = vadd.f32 0.0, %v884
        %886 = vdwg.mxu0
        %v887 = vadd.f32 %v799, %v878
        %v888 = vadd.f32 %v800, %v880
        %v889 = vadd.f32 %v801, %v883
        %v890 = vadd.f32 %v802, %v885
        %891 = vst [vmem:[#allocation3] sm:$0xff] %v887
        %892 = vst [vmem:[#allocation3 + $0x8] sm:$0xff] %v888
        %893 = vst [vmem:[#allocation3 + $0x10] sm:$0xff] %v889
        %894 = vst [vmem:[#allocation3 + $0x18] sm:$0xff] %v890
        %v895 = vld [vmem:[#allocation2 + $0x8] sm:$0xff]
        %v896 = vld [vmem:[#allocation2 + $0x10] sm:$0xff]
        %v897 = vld [vmem:[#allocation2 + $0x18] sm:$0xff]
        %v898 = vld [vmem:[#allocation2 + $0x20] sm:$0xff]
        %v899 = vpack.c.bf16 %v896, %v895
        %v900 = vpack.c.bf16 %v898, %v897
        %v901 = vld [vmem:[#allocation3] sm:$0xff]
        %v902 = vld [vmem:[#allocation3 + $0x8] sm:$0xff]
        %v903 = vld [vmem:[#allocation3 + $0x10] sm:$0xff]
        %v904 = vld [vmem:[#allocation3 + $0x18] sm:$0xff]
        %s905 = scalar_lea.vmem [#allocation10], 192
        %v906 = vld [vmem:[%s905] sm:$0xf]
        %v907 = vld [vmem:[%s905 + $0x4] sm:$0xf]
        %v908 = vld [vmem:[%s905 + $0x8] sm:$0xf]
        %v909 = vld [vmem:[%s905 + $0xc] sm:$0xf]
        %v910 = vld [vmem:[%s905 + $0x10] sm:$0xf]
        %v911 = vld [vmem:[%s905 + $0x14] sm:$0xf]
        %v912 = vld [vmem:[%s905 + $0x18] sm:$0xf]
        %v913 = vld [vmem:[%s905 + $0x1c] sm:$0xf]
        %v914 = vld [vmem:[%s905 + $0x20] sm:$0xf]
        %v915 = vld [vmem:[%s905 + $0x24] sm:$0xf]
        %v916 = vld [vmem:[%s905 + $0x28] sm:$0xf]
        %v917 = vld [vmem:[%s905 + $0x2c] sm:$0xf]
        %v918 = vld [vmem:[%s905 + $0x30] sm:$0xf]
        %v919 = vld [vmem:[%s905 + $0x34] sm:$0xf]
        %v920 = vld [vmem:[%s905 + $0x38] sm:$0xf]
        %v921 = vld [vmem:[%s905 + $0x3c] sm:$0xf]
        %v938 = vunpack.c.l.b16 %v906
        %v939 = vunpack.c.l.b16 %v907
        %v940 = vunpack.c.l.b16 %v908
        %v941 = vunpack.c.l.b16 %v909
        %v942 = vunpack.c.l.b16 %v910
        %v943 = vunpack.c.l.b16 %v911
        %v944 = vunpack.c.l.b16 %v912
        %v945 = vunpack.c.l.b16 %v913
        %v946 = vunpack.c.l.b16 %v914
        %v947 = vunpack.c.l.b16 %v915
        %v948 = vunpack.c.l.b16 %v916
        %v949 = vunpack.c.l.b16 %v917
        %v950 = vunpack.c.l.b16 %v918
        %v951 = vunpack.c.l.b16 %v919
        %v952 = vunpack.c.l.b16 %v920
        %v953 = vunpack.c.l.b16 %v921
        %v954 = vpack.c.b16 %v939, %v938
        %v955 = vpack.c.b16 %v941, %v940
        %v956 = vpack.c.b16 %v943, %v942
        %v957 = vpack.c.b16 %v945, %v944
        %v958 = vpack.c.b16 %v947, %v946
        %v959 = vpack.c.b16 %v949, %v948
        %v960 = vpack.c.b16 %v951, %v950
        %v961 = vpack.c.b16 %v953, %v952
        %970 = vmatpush.bf16.msra.mxu0 %v961
        %971 = vmatpush.bf16.msra.mxu0 %v960
        %972 = vmatpush.bf16.msra.mxu0 %v959
        %973 = vmatpush.bf16.msra.mxu0 %v958
        %974 = vmatpush.bf16.msra.mxu0 %v957
        %975 = vmatpush.bf16.msra.mxu0 %v956
        %976 = vmatpush.bf16.msra.mxu0 %v955
        %977 = vmatpush.bf16.msra.mxu0 %v954
        %978 = vmatmul.bf16.gmra.mxu0 %v899
        %v979 = vpop.f32.mrf.mxu0
        %v980 = vadd.f32 0.0, %v979
        %v981 = vpop.f32.mrf.mxu0
        %v982 = vadd.f32 0.0, %v981
        %983 = vmatmul.bf16.gmra.mxu0 %v900
        %v984 = vpop.f32.mrf.mxu0
        %v985 = vadd.f32 0.0, %v984
        %v986 = vpop.f32.mrf.mxu0
        %v987 = vadd.f32 0.0, %v986
        %988 = vdwg.mxu0
        %v989 = vadd.f32 %v901, %v980
        %v990 = vadd.f32 %v902, %v982
        %v991 = vadd.f32 %v903, %v985
        %v992 = vadd.f32 %v904, %v987
        %993 = vst [vmem:[#allocation3] sm:$0xff] %v989
        %994 = vst [vmem:[#allocation3 + $0x8] sm:$0xff] %v990
        %995 = vst [vmem:[#allocation3 + $0x10] sm:$0xff] %v991
        %996 = vst [vmem:[#allocation3 + $0x18] sm:$0xff] %v992
        %v997 = vld [vmem:[%s401 + $0x8] sm:$0xff]
        %v998 = vld [vmem:[%s401 + $0x10] sm:$0xff]
        %v999 = vld [vmem:[%s401 + $0x18] sm:$0xff]
        %v1000 = vld [vmem:[%s401 + $0x20] sm:$0xff]
        %v1001 = vpack.c.bf16 %v998, %v997
        %v1002 = vpack.c.bf16 %v1000, %v999
        %v1003 = vld [vmem:[#allocation3] sm:$0xff]
        %v1004 = vld [vmem:[#allocation3 + $0x8] sm:$0xff]
        %v1005 = vld [vmem:[#allocation3 + $0x10] sm:$0xff]
        %v1006 = vld [vmem:[#allocation3 + $0x18] sm:$0xff]
        %s1007 = scalar_lea.vmem [#allocation10], 256
        %v1008 = vld [vmem:[%s1007] sm:$0xf]
        %v1009 = vld [vmem:[%s1007 + $0x4] sm:$0xf]
        %v1010 = vld [vmem:[%s1007 + $0x8] sm:$0xf]
        %v1011 = vld [vmem:[%s1007 + $0xc] sm:$0xf]
        %v1012 = vld [vmem:[%s1007 + $0x10] sm:$0xf]
        %v1013 = vld [vmem:[%s1007 + $0x14] sm:$0xf]
        %v1014 = vld [vmem:[%s1007 + $0x18] sm:$0xf]
        %v1015 = vld [vmem:[%s1007 + $0x1c] sm:$0xf]
        %v1016 = vld [vmem:[%s1007 + $0x20] sm:$0xf]
        %v1017 = vld [vmem:[%s1007 + $0x24] sm:$0xf]
        %v1018 = vld [vmem:[%s1007 + $0x28] sm:$0xf]
        %v1019 = vld [vmem:[%s1007 + $0x2c] sm:$0xf]
        %v1020 = vld [vmem:[%s1007 + $0x30] sm:$0xf]
        %v1021 = vld [vmem:[%s1007 + $0x34] sm:$0xf]
        %v1022 = vld [vmem:[%s1007 + $0x38] sm:$0xf]
        %v1023 = vld [vmem:[%s1007 + $0x3c] sm:$0xf]
        %v1040 = vunpack.c.l.b16 %v1008
        %v1041 = vunpack.c.l.b16 %v1009
        %v1042 = vunpack.c.l.b16 %v1010
        %v1043 = vunpack.c.l.b16 %v1011
        %v1044 = vunpack.c.l.b16 %v1012
        %v1045 = vunpack.c.l.b16 %v1013
        %v1046 = vunpack.c.l.b16 %v1014
        %v1047 = vunpack.c.l.b16 %v1015
        %v1048 = vunpack.c.l.b16 %v1016
        %v1049 = vunpack.c.l.b16 %v1017
        %v1050 = vunpack.c.l.b16 %v1018
        %v1051 = vunpack.c.l.b16 %v1019
        %v1052 = vunpack.c.l.b16 %v1020
        %v1053 = vunpack.c.l.b16 %v1021
        %v1054 = vunpack.c.l.b16 %v1022
        %v1055 = vunpack.c.l.b16 %v1023
        %v1056 = vpack.c.b16 %v1041, %v1040
        %v1057 = vpack.c.b16 %v1043, %v1042
        %v1058 = vpack.c.b16 %v1045, %v1044
        %v1059 = vpack.c.b16 %v1047, %v1046
        %v1060 = vpack.c.b16 %v1049, %v1048
        %v1061 = vpack.c.b16 %v1051, %v1050
        %v1062 = vpack.c.b16 %v1053, %v1052
        %v1063 = vpack.c.b16 %v1055, %v1054
        %1072 = vmatpush.bf16.msra.mxu0 %v1063
        %1073 = vmatpush.bf16.msra.mxu0 %v1062
        %1074 = vmatpush.bf16.msra.mxu0 %v1061
        %1075 = vmatpush.bf16.msra.mxu0 %v1060
        %1076 = vmatpush.bf16.msra.mxu0 %v1059
        %1077 = vmatpush.bf16.msra.mxu0 %v1058
        %1078 = vmatpush.bf16.msra.mxu0 %v1057
        %1079 = vmatpush.bf16.msra.mxu0 %v1056
        %1080 = vmatmul.bf16.gmra.mxu0 %v1001
        %v1081 = vpop.f32.mrf.mxu0
        %v1082 = vadd.f32 0.0, %v1081
        %v1083 = vpop.f32.mrf.mxu0
        %v1084 = vadd.f32 0.0, %v1083
        %1085 = vmatmul.bf16.gmra.mxu0 %v1002
        %v1086 = vpop.f32.mrf.mxu0
        %v1087 = vadd.f32 0.0, %v1086
        %v1088 = vpop.f32.mrf.mxu0
        %v1089 = vadd.f32 0.0, %v1088
        %1090 = vdwg.mxu0
        %v1091 = vadd.f32 %v1003, %v1082
        %v1092 = vadd.f32 %v1004, %v1084
        %v1093 = vadd.f32 %v1005, %v1087
        %v1094 = vadd.f32 %v1006, %v1089
        %1095 = vst [vmem:[#allocation3] sm:$0xff] %v1091
        %1096 = vst [vmem:[#allocation3 + $0x8] sm:$0xff] %v1092
        %1097 = vst [vmem:[#allocation3 + $0x10] sm:$0xff] %v1093
        %1098 = vst [vmem:[#allocation3 + $0x18] sm:$0xff] %v1094
        %v1099 = vld [vmem:[%s579 + $0x8] sm:$0xff]
        %v1100 = vld [vmem:[%s579 + $0x10] sm:$0xff]
        %v1101 = vld [vmem:[%s579 + $0x18] sm:$0xff]
        %v1102 = vld [vmem:[%s579 + $0x20] sm:$0xff]
        %v1103 = vpack.c.bf16 %v1100, %v1099
        %v1104 = vpack.c.bf16 %v1102, %v1101
        %v1105 = vld [vmem:[#allocation3] sm:$0xff]
        %v1106 = vld [vmem:[#allocation3 + $0x8] sm:$0xff]
        %v1107 = vld [vmem:[#allocation3 + $0x10] sm:$0xff]
        %v1108 = vld [vmem:[#allocation3 + $0x18] sm:$0xff]
        %s1109 = scalar_lea.vmem [#allocation10], 320
        %v1110 = vld [vmem:[%s1109] sm:$0xf]
        %v1111 = vld [vmem:[%s1109 + $0x4] sm:$0xf]
        %v1112 = vld [vmem:[%s1109 + $0x8] sm:$0xf]
        %v1113 = vld [vmem:[%s1109 + $0xc] sm:$0xf]
        %v1114 = vld [vmem:[%s1109 + $0x10] sm:$0xf]
        %v1115 = vld [vmem:[%s1109 + $0x14] sm:$0xf]
        %v1116 = vld [vmem:[%s1109 + $0x18] sm:$0xf]
        %v1117 = vld [vmem:[%s1109 + $0x1c] sm:$0xf]
        %v1118 = vld [vmem:[%s1109 + $0x20] sm:$0xf]
        %v1119 = vld [vmem:[%s1109 + $0x24] sm:$0xf]
        %v1120 = vld [vmem:[%s1109 + $0x28] sm:$0xf]
        %v1121 = vld [vmem:[%s1109 + $0x2c] sm:$0xf]
        %v1122 = vld [vmem:[%s1109 + $0x30] sm:$0xf]
        %v1123 = vld [vmem:[%s1109 + $0x34] sm:$0xf]
        %v1124 = vld [vmem:[%s1109 + $0x38] sm:$0xf]
        %v1125 = vld [vmem:[%s1109 + $0x3c] sm:$0xf]
        %v1142 = vunpack.c.l.b16 %v1110
        %v1143 = vunpack.c.l.b16 %v1111
        %v1144 = vunpack.c.l.b16 %v1112
        %v1145 = vunpack.c.l.b16 %v1113
        %v1146 = vunpack.c.l.b16 %v1114
        %v1147 = vunpack.c.l.b16 %v1115
        %v1148 = vunpack.c.l.b16 %v1116
        %v1149 = vunpack.c.l.b16 %v1117
        %v1150 = vunpack.c.l.b16 %v1118
        %v1151 = vunpack.c.l.b16 %v1119
        %v1152 = vunpack.c.l.b16 %v1120
        %v1153 = vunpack.c.l.b16 %v1121
        %v1154 = vunpack.c.l.b16 %v1122
        %v1155 = vunpack.c.l.b16 %v1123
        %v1156 = vunpack.c.l.b16 %v1124
        %v1157 = vunpack.c.l.b16 %v1125
        %v1158 = vpack.c.b16 %v1143, %v1142
        %v1159 = vpack.c.b16 %v1145, %v1144
        %v1160 = vpack.c.b16 %v1147, %v1146
        %v1161 = vpack.c.b16 %v1149, %v1148
        %v1162 = vpack.c.b16 %v1151, %v1150
        %v1163 = vpack.c.b16 %v1153, %v1152
        %v1164 = vpack.c.b16 %v1155, %v1154
        %v1165 = vpack.c.b16 %v1157, %v1156
        %1174 = vmatpush.bf16.msra.mxu0 %v1165
        %1175 = vmatpush.bf16.msra.mxu0 %v1164
        %1176 = vmatpush.bf16.msra.mxu0 %v1163
        %1177 = vmatpush.bf16.msra.mxu0 %v1162
        %1178 = vmatpush.bf16.msra.mxu0 %v1161
        %1179 = vmatpush.bf16.msra.mxu0 %v1160
        %1180 = vmatpush.bf16.msra.mxu0 %v1159
        %1181 = vmatpush.bf16.msra.mxu0 %v1158
        %1182 = vmatmul.bf16.gmra.mxu0 %v1103
        %v1183 = vpop.f32.mrf.mxu0
        %v1184 = vadd.f32 0.0, %v1183
        %v1185 = vpop.f32.mrf.mxu0
        %v1186 = vadd.f32 0.0, %v1185
        %1187 = vmatmul.bf16.gmra.mxu0 %v1104
        %v1188 = vpop.f32.mrf.mxu0
        %v1189 = vadd.f32 0.0, %v1188
        %v1190 = vpop.f32.mrf.mxu0
        %v1191 = vadd.f32 0.0, %v1190
        %1192 = vdwg.mxu0
        %v1193 = vadd.f32 %v1105, %v1184
        %v1194 = vadd.f32 %v1106, %v1186
        %v1195 = vadd.f32 %v1107, %v1189
        %v1196 = vadd.f32 %v1108, %v1191
        %1197 = vst [vmem:[#allocation3] sm:$0xff] %v1193
        %1198 = vst [vmem:[#allocation3 + $0x8] sm:$0xff] %v1194
        %1199 = vst [vmem:[#allocation3 + $0x10] sm:$0xff] %v1195
        %1200 = vst [vmem:[#allocation3 + $0x18] sm:$0xff] %v1196
        %v1201 = vld [vmem:[#allocation2 + $0x10] sm:$0xff]
        %v1202 = vld [vmem:[#allocation2 + $0x18] sm:$0xff]
        %v1203 = vld [vmem:[#allocation2 + $0x20] sm:$0xff]
        %v1204 = vld [vmem:[#allocation2 + $0x28] sm:$0xff]
        %v1205 = vpack.c.bf16 %v1202, %v1201
        %v1206 = vpack.c.bf16 %v1204, %v1203
        %v1207 = vld [vmem:[#allocation3] sm:$0xff]
        %v1208 = vld [vmem:[#allocation3 + $0x8] sm:$0xff]
        %v1209 = vld [vmem:[#allocation3 + $0x10] sm:$0xff]
        %v1210 = vld [vmem:[#allocation3 + $0x18] sm:$0xff]
        %s1211 = scalar_lea.vmem [#allocation10], 384
        %v1212 = vld [vmem:[%s1211] sm:$0xf]
        %v1213 = vld [vmem:[%s1211 + $0x4] sm:$0xf]
        %v1214 = vld [vmem:[%s1211 + $0x8] sm:$0xf]
        %v1215 = vld [vmem:[%s1211 + $0xc] sm:$0xf]
        %v1216 = vld [vmem:[%s1211 + $0x10] sm:$0xf]
        %v1217 = vld [vmem:[%s1211 + $0x14] sm:$0xf]
        %v1218 = vld [vmem:[%s1211 + $0x18] sm:$0xf]
        %v1219 = vld [vmem:[%s1211 + $0x1c] sm:$0xf]
        %v1220 = vld [vmem:[%s1211 + $0x20] sm:$0xf]
        %v1221 = vld [vmem:[%s1211 + $0x24] sm:$0xf]
        %v1222 = vld [vmem:[%s1211 + $0x28] sm:$0xf]
        %v1223 = vld [vmem:[%s1211 + $0x2c] sm:$0xf]
        %v1224 = vld [vmem:[%s1211 + $0x30] sm:$0xf]
        %v1225 = vld [vmem:[%s1211 + $0x34] sm:$0xf]
        %v1226 = vld [vmem:[%s1211 + $0x38] sm:$0xf]
        %v1227 = vld [vmem:[%s1211 + $0x3c] sm:$0xf]
        %v1244 = vunpack.c.l.b16 %v1212
        %v1245 = vunpack.c.l.b16 %v1213
        %v1246 = vunpack.c.l.b16 %v1214
        %v1247 = vunpack.c.l.b16 %v1215
        %v1248 = vunpack.c.l.b16 %v1216
        %v1249 = vunpack.c.l.b16 %v1217
        %v1250 = vunpack.c.l.b16 %v1218
        %v1251 = vunpack.c.l.b16 %v1219
        %v1252 = vunpack.c.l.b16 %v1220
        %v1253 = vunpack.c.l.b16 %v1221
        %v1254 = vunpack.c.l.b16 %v1222
        %v1255 = vunpack.c.l.b16 %v1223
        %v1256 = vunpack.c.l.b16 %v1224
        %v1257 = vunpack.c.l.b16 %v1225
        %v1258 = vunpack.c.l.b16 %v1226
        %v1259 = vunpack.c.l.b16 %v1227
        %v1260 = vpack.c.b16 %v1245, %v1244
        %v1261 = vpack.c.b16 %v1247, %v1246
        %v1262 = vpack.c.b16 %v1249, %v1248
        %v1263 = vpack.c.b16 %v1251, %v1250
        %v1264 = vpack.c.b16 %v1253, %v1252
        %v1265 = vpack.c.b16 %v1255, %v1254
        %v1266 = vpack.c.b16 %v1257, %v1256
        %v1267 = vpack.c.b16 %v1259, %v1258
        %1276 = vmatpush.bf16.msra.mxu0 %v1267
        %1277 = vmatpush.bf16.msra.mxu0 %v1266
        %1278 = vmatpush.bf16.msra.mxu0 %v1265
        %1279 = vmatpush.bf16.msra.mxu0 %v1264
        %1280 = vmatpush.bf16.msra.mxu0 %v1263
        %1281 = vmatpush.bf16.msra.mxu0 %v1262
        %1282 = vmatpush.bf16.msra.mxu0 %v1261
        %1283 = vmatpush.bf16.msra.mxu0 %v1260
        %1284 = vmatmul.bf16.gmra.mxu0 %v1205
        %v1285 = vpop.f32.mrf.mxu0
        %v1286 = vadd.f32 0.0, %v1285
        %v1287 = vpop.f32.mrf.mxu0
        %v1288 = vadd.f32 0.0, %v1287
        %1289 = vmatmul.bf16.gmra.mxu0 %v1206
        %v1290 = vpop.f32.mrf.mxu0
        %v1291 = vadd.f32 0.0, %v1290
        %v1292 = vpop.f32.mrf.mxu0
        %v1293 = vadd.f32 0.0, %v1292
        %1294 = vdwg.mxu0
        %v1295 = vadd.f32 %v1207, %v1286
        %v1296 = vadd.f32 %v1208, %v1288
        %v1297 = vadd.f32 %v1209, %v1291
        %v1298 = vadd.f32 %v1210, %v1293
        %1299 = vst [vmem:[#allocation3] sm:$0xff] %v1295
        %1300 = vst [vmem:[#allocation3 + $0x8] sm:$0xff] %v1296
        %1301 = vst [vmem:[#allocation3 + $0x10] sm:$0xff] %v1297
        %1302 = vst [vmem:[#allocation3 + $0x18] sm:$0xff] %v1298
        %v1303 = vld [vmem:[%s401 + $0x10] sm:$0xff]
        %v1304 = vld [vmem:[%s401 + $0x18] sm:$0xff]
        %v1305 = vld [vmem:[%s401 + $0x20] sm:$0xff]
        %v1306 = vld [vmem:[%s401 + $0x28] sm:$0xff]
        %v1307 = vpack.c.bf16 %v1304, %v1303
        %v1308 = vpack.c.bf16 %v1306, %v1305
        %v1309 = vld [vmem:[#allocation3] sm:$0xff]
        %v1310 = vld [vmem:[#allocation3 + $0x8] sm:$0xff]
        %v1311 = vld [vmem:[#allocation3 + $0x10] sm:$0xff]
        %v1312 = vld [vmem:[#allocation3 + $0x18] sm:$0xff]
        %s1313 = scalar_lea.vmem [#allocation10], 448
        %v1314 = vld [vmem:[%s1313] sm:$0xf]
        %v1315 = vld [vmem:[%s1313 + $0x4] sm:$0xf]
        %v1316 = vld [vmem:[%s1313 + $0x8] sm:$0xf]
        %v1317 = vld [vmem:[%s1313 + $0xc] sm:$0xf]
        %v1318 = vld [vmem:[%s1313 + $0x10] sm:$0xf]
        %v1319 = vld [vmem:[%s1313 + $0x14] sm:$0xf]
        %v1320 = vld [vmem:[%s1313 + $0x18] sm:$0xf]
        %v1321 = vld [vmem:[%s1313 + $0x1c] sm:$0xf]
        %v1322 = vld [vmem:[%s1313 + $0x20] sm:$0xf]
        %v1323 = vld [vmem:[%s1313 + $0x24] sm:$0xf]
        %v1324 = vld [vmem:[%s1313 + $0x28] sm:$0xf]
        %v1325 = vld [vmem:[%s1313 + $0x2c] sm:$0xf]
        %v1326 = vld [vmem:[%s1313 + $0x30] sm:$0xf]
        %v1327 = vld [vmem:[%s1313 + $0x34] sm:$0xf]
        %v1328 = vld [vmem:[%s1313 + $0x38] sm:$0xf]
        %v1329 = vld [vmem:[%s1313 + $0x3c] sm:$0xf]
        %v1346 = vunpack.c.l.b16 %v1314
        %v1347 = vunpack.c.l.b16 %v1315
        %v1348 = vunpack.c.l.b16 %v1316
        %v1349 = vunpack.c.l.b16 %v1317
        %v1350 = vunpack.c.l.b16 %v1318
        %v1351 = vunpack.c.l.b16 %v1319
        %v1352 = vunpack.c.l.b16 %v1320
        %v1353 = vunpack.c.l.b16 %v1321
        %v1354 = vunpack.c.l.b16 %v1322
        %v1355 = vunpack.c.l.b16 %v1323
        %v1356 = vunpack.c.l.b16 %v1324
        %v1357 = vunpack.c.l.b16 %v1325
        %v1358 = vunpack.c.l.b16 %v1326
        %v1359 = vunpack.c.l.b16 %v1327
        %v1360 = vunpack.c.l.b16 %v1328
        %v1361 = vunpack.c.l.b16 %v1329
        %v1362 = vpack.c.b16 %v1347, %v1346
        %v1363 = vpack.c.b16 %v1349, %v1348
        %v1364 = vpack.c.b16 %v1351, %v1350
        %v1365 = vpack.c.b16 %v1353, %v1352
        %v1366 = vpack.c.b16 %v1355, %v1354
        %v1367 = vpack.c.b16 %v1357, %v1356
        %v1368 = vpack.c.b16 %v1359, %v1358
        %v1369 = vpack.c.b16 %v1361, %v1360
        %1378 = vmatpush.bf16.msra.mxu0 %v1369
        %1379 = vmatpush.bf16.msra.mxu0 %v1368
        %1380 = vmatpush.bf16.msra.mxu0 %v1367
        %1381 = vmatpush.bf16.msra.mxu0 %v1366
        %1382 = vmatpush.bf16.msra.mxu0 %v1365
        %1383 = vmatpush.bf16.msra.mxu0 %v1364
        %1384 = vmatpush.bf16.msra.mxu0 %v1363
        %1385 = vmatpush.bf16.msra.mxu0 %v1362
        %1386 = vmatmul.bf16.gmra.mxu0 %v1307
        %v1387 = vpop.f32.mrf.mxu0
        %v1388 = vadd.f32 0.0, %v1387
        %v1389 = vpop.f32.mrf.mxu0
        %v1390 = vadd.f32 0.0, %v1389
        %1391 = vmatmul.bf16.gmra.mxu0 %v1308
        %v1392 = vpop.f32.mrf.mxu0
        %v1393 = vadd.f32 0.0, %v1392
        %v1394 = vpop.f32.mrf.mxu0
        %v1395 = vadd.f32 0.0, %v1394
        %1396 = vdwg.mxu0
        %v1397 = vadd.f32 %v1309, %v1388
        %v1398 = vadd.f32 %v1310, %v1390
        %v1399 = vadd.f32 %v1311, %v1393
        %v1400 = vadd.f32 %v1312, %v1395
        %1401 = vst [vmem:[#allocation3] sm:$0xff] %v1397
        %1402 = vst [vmem:[#allocation3 + $0x8] sm:$0xff] %v1398
        %1403 = vst [vmem:[#allocation3 + $0x10] sm:$0xff] %v1399
        %1404 = vst [vmem:[#allocation3 + $0x18] sm:$0xff] %v1400
        %v1405 = vld [vmem:[%s579 + $0x10] sm:$0xff]
        %v1406 = vld [vmem:[%s579 + $0x18] sm:$0xff]
        %v1407 = vld [vmem:[%s579 + $0x20] sm:$0xff]
        %v1408 = vld [vmem:[%s579 + $0x28] sm:$0xff]
        %v1409 = vpack.c.bf16 %v1406, %v1405
        %v1410 = vpack.c.bf16 %v1408, %v1407
        %v1411 = vld [vmem:[#allocation3] sm:$0xff]
        %v1412 = vld [vmem:[#allocation3 + $0x8] sm:$0xff]
        %v1413 = vld [vmem:[#allocation3 + $0x10] sm:$0xff]
        %v1414 = vld [vmem:[#allocation3 + $0x18] sm:$0xff]
        %s1415 = scalar_lea.vmem [#allocation10], 512
        %v1416 = vld [vmem:[%s1415] sm:$0xf]
        %v1417 = vld [vmem:[%s1415 + $0x4] sm:$0xf]
        %v1418 = vld [vmem:[%s1415 + $0x8] sm:$0xf]
        %v1419 = vld [vmem:[%s1415 + $0xc] sm:$0xf]
        %v1420 = vld [vmem:[%s1415 + $0x10] sm:$0xf]
        %v1421 = vld [vmem:[%s1415 + $0x14] sm:$0xf]
        %v1422 = vld [vmem:[%s1415 + $0x18] sm:$0xf]
        %v1423 = vld [vmem:[%s1415 + $0x1c] sm:$0xf]
        %v1424 = vld [vmem:[%s1415 + $0x20] sm:$0xf]
        %v1425 = vld [vmem:[%s1415 + $0x24] sm:$0xf]
        %v1426 = vld [vmem:[%s1415 + $0x28] sm:$0xf]
        %v1427 = vld [vmem:[%s1415 + $0x2c] sm:$0xf]
        %v1428 = vld [vmem:[%s1415 + $0x30] sm:$0xf]
        %v1429 = vld [vmem:[%s1415 + $0x34] sm:$0xf]
        %v1430 = vld [vmem:[%s1415 + $0x38] sm:$0xf]
        %v1431 = vld [vmem:[%s1415 + $0x3c] sm:$0xf]
        %v1448 = vunpack.c.l.b16 %v1416
        %v1449 = vunpack.c.l.b16 %v1417
        %v1450 = vunpack.c.l.b16 %v1418
        %v1451 = vunpack.c.l.b16 %v1419
        %v1452 = vunpack.c.l.b16 %v1420
        %v1453 = vunpack.c.l.b16 %v1421
        %v1454 = vunpack.c.l.b16 %v1422
        %v1455 = vunpack.c.l.b16 %v1423
        %v1456 = vunpack.c.l.b16 %v1424
        %v1457 = vunpack.c.l.b16 %v1425
        %v1458 = vunpack.c.l.b16 %v1426
        %v1459 = vunpack.c.l.b16 %v1427
        %v1460 = vunpack.c.l.b16 %v1428
        %v1461 = vunpack.c.l.b16 %v1429
        %v1462 = vunpack.c.l.b16 %v1430
        %v1463 = vunpack.c.l.b16 %v1431
        %v1464 = vpack.c.b16 %v1449, %v1448
        %v1465 = vpack.c.b16 %v1451, %v1450
        %v1466 = vpack.c.b16 %v1453, %v1452
        %v1467 = vpack.c.b16 %v1455, %v1454
        %v1468 = vpack.c.b16 %v1457, %v1456
        %v1469 = vpack.c.b16 %v1459, %v1458
        %v1470 = vpack.c.b16 %v1461, %v1460
        %v1471 = vpack.c.b16 %v1463, %v1462
        %1480 = vmatpush.bf16.msra.mxu0 %v1471
        %1481 = vmatpush.bf16.msra.mxu0 %v1470
        %1482 = vmatpush.bf16.msra.mxu0 %v1469
        %1483 = vmatpush.bf16.msra.mxu0 %v1468
        %1484 = vmatpush.bf16.msra.mxu0 %v1467
        %1485 = vmatpush.bf16.msra.mxu0 %v1466
        %1486 = vmatpush.bf16.msra.mxu0 %v1465
        %1487 = vmatpush.bf16.msra.mxu0 %v1464
        %1488 = vmatmul.bf16.gmra.mxu0 %v1409
        %v1489 = vpop.f32.mrf.mxu0
        %v1490 = vadd.f32 0.0, %v1489
        %v1491 = vpop.f32.mrf.mxu0
        %v1492 = vadd.f32 0.0, %v1491
        %1493 = vmatmul.bf16.gmra.mxu0 %v1410
        %v1494 = vpop.f32.mrf.mxu0
        %v1495 = vadd.f32 0.0, %v1494
        %v1496 = vpop.f32.mrf.mxu0
        %v1497 = vadd.f32 0.0, %v1496
        %1498 = vdwg.mxu0
        %v1499 = vadd.f32 %v1411, %v1490
        %v1500 = vadd.f32 %v1412, %v1492
        %v1501 = vadd.f32 %v1413, %v1495
        %v1502 = vadd.f32 %v1414, %v1497
        %1503 = vst [vmem:[#allocation3] sm:$0xff] %v1499
        %1504 = vst [vmem:[#allocation3 + $0x8] sm:$0xff] %v1500
        %1505 = vst [vmem:[#allocation3 + $0x10] sm:$0xff] %v1501
        %1506 = vst [vmem:[#allocation3 + $0x18] sm:$0xff] %v1502
        %v1507 = vld [vmem:[%s4] sm:$0x1]
        %v1508 = vld [vmem:[%s4 + $0x1] sm:$0x1]
        %v1509 = vld [vmem:[#allocation3] sm:$0xff]
        %v1510 = vld [vmem:[#allocation3 + $0x8] sm:$0xff]
        %v1511 = vld [vmem:[#allocation3 + $0x10] sm:$0xff]
        %v1512 = vld [vmem:[#allocation3 + $0x18] sm:$0xff]
        %v1513 = vperm.slane %v1507, 0
        %v1514 = vmul.f32 %v1509, %v1513
        %v1515 = vmul.f32 %v1510, %v1513
        %v1516 = vmul.f32 %v1511, %v1513
        %v1517 = vmul.f32 %v1512, %v1513
        %v1518 = vperm.slane %v1508, 0
        %v1519 = vadd.f32 %v1514, %v1518
        %v1520 = vadd.f32 %v1515, %v1518
        %v1521 = vadd.f32 %v1516, %v1518
        %v1522 = vadd.f32 %v1517, %v1518
        %v1523 = vld [vmem:[%s324] sm:$0xff]
        %v1524 = vld [vmem:[%s324 + $0x8] sm:$0xff]
        %v1525 = vld [vmem:[%s324 + $0x10] sm:$0xff]
        %v1526 = vld [vmem:[%s324 + $0x18] sm:$0xff]
        %v1527 = vadd.f32 %v1519, %v1523
        %v1528 = vadd.f32 %v1520, %v1524
        %v1529 = vadd.f32 %v1521, %v1525
        %v1530 = vadd.f32 %v1522, %v1526
        %v1531 = vmax.f32 %v1527, 0.0
        %v1532 = vmax.f32 %v1528, 0.0
        %v1533 = vmax.f32 %v1529, 0.0
        %v1534 = vmax.f32 %v1530, 0.0
        %1535 = vst [vmem:[%s386] sm:$0xff] %v1531
        %1536 = vst [vmem:[%s386 + $0x8] sm:$0xff] %v1532
        %1537 = vst [vmem:[%s386 + $0x10] sm:$0xff] %v1533
        %1538 = vst [vmem:[%s386 + $0x18] sm:$0xff] %v1534
        %s1539 = sand.u32 %s190, 1
        %s1540 = scalar_lea.sflag [#allocation6], %s1539
        %s1541 = sand.u32 %s190, 1
        %s1542 = smul.addr %s1541, 32
        %s1543 = scalar_lea.vmem [#allocation12], %s1542
        // Predicated region
        $region65: #{tpu_custom_call.1} parent=39 // pred_check
          %p1544 = pneg %p200
        $region66: #{tpu_custom_call.1} parent=39 // pred_check_branch
          %1546 = sbr.rel (%p1544) target = $region68
        $region67: #{tpu_custom_call.1} parent=39 // pred_region
          %s1547 = smul.u32 4, %s31
          %1549 = vsyncadd %s1540, 0
          %s1550 = smul.addr %s30, 8
          %s1551 = sadd.s32 %s1547, %s1550
          %s1552 = smul.addr %s1551, 8
          %s1553 = scalar_lea.hbm %s5, %s1552
          %s1554 = sshll.u32 %s1543, 4
          %s1555 = int_to_ptr.vmem [resolvable:$true] %s1554
          %s1556 = sshll.u32 %s1553, 4
          %s1557 = int_to_ptr.hbm [resolvable:$true] %s1556
          %1562 = dma.vmem_to_hbm [thread:$0]  %s1555, 512, %s1557, %s1540, 128, 128, 8
        $region68: #{tpu_custom_call.1} parent=39 // pred_fallthru
          _
      $region40: #{tpu_custom_call.1} parent=5 // pred_fallthru
        _
      %p1563 = scmp.le.s32.totalorder 2, %s21
      // Predicated region
      $region69: #{tpu_custom_call.1} parent=5 // pred_check
        %p1564 = pneg %p1563
      $region70: #{tpu_custom_call.1} parent=5 // pred_check_branch
        %1566 = sbr.rel (%p1564) target = $region72
      $region71: #{tpu_custom_call.1} parent=5 // pred_region
        %s1567 = ssub.s32 %s21, 2
        // Predicated region
        $region73: #{tpu_custom_call.1} parent=71 // pred_check
          %p1568 = pneg %p206
        $region74: #{tpu_custom_call.1} parent=71 // pred_check_branch
          %1570 = sbr.rel (%p1568) target = $region76
        $region75: #{tpu_custom_call.1} parent=71 // pred_region
          %s1571 = sand.u32 %s191, 1
          %s1572 = scalar_lea.sflag [#allocation6], %s1571
          %s1573 = sand.u32 %s191, 1
          %s1574 = smul.addr %s1573, 32
          %s1575 = scalar_lea.vmem [#allocation12], %s1574
          %1577 = dma.done %s1572, 512
        $region76: #{tpu_custom_call.1} parent=71 // pred_fallthru
          _
      $region72: #{tpu_custom_call.1} parent=5 // pred_fallthru
        _
    $region6: #{tpu_custom_call.1} parent=1 // loop_footer
      %s25 = sadd.s32 1, %s21
    $region7: #{tpu_custom_call.1} parent=1 // loop_footer_branch
      %20 = sbr.rel target = $region3
    $region8: #{tpu_custom_call.1} parent=1 // loop_exit
      _
    %1578 = vsyncpa [#allocation5], 1
    %s1579 = scalar_lea.sflag [#allocation5], 1
    %1580 = vsyncpa %s1579, 1
    %1581 = vsyncpa [#allocation8], 1
    %s1582 = scalar_lea.sflag [#allocation8], 1
    %1583 = vsyncpa %s1582, 1
    %1584 = vsyncpa [#allocation11], 1
    %1585 = vsyncpa [#allocation6], 1
    %s1586 = scalar_lea.sflag [#allocation6], 1
    %1587 = vsyncpa %s1586, 1

</llo_original>
